<compile_context>
chip_gen: v6e
topology: v6e:2x2x1
jax: 0.10.0
libtpu: 0.0.40
codegen_flags: <defaults>
</compile_context>

<pallas_src>
import functools

import jax
import jax.numpy as jnp
import numpy as np
from jax.experimental import pallas as pl
from jax.experimental.pallas import tpu as pltpu

C_PAD = 128          # lane-dense class padding
NEG_BIG = -1e30      # finite mask value for padded classes (no inf math)


def graphsage_kernel(self_feat_ref, adj_ref, neigh_feat_ref, deg_inv_ref,
                     w_self_ref, w_neigh_ref, w_cls_ref, out_ref, acc_ref,
                     *, num_classes):
    k = pl.program_id(1)

    @pl.when(k == 0)
    def _():
        acc_ref[...] = jnp.zeros_like(acc_ref)

    # --- neighbor aggregation: int8 {0,1} adjacency -> bf16 (exact values),
    #     MXU matmul with f32 accumulation into the VMEM scratch ---
    adj_bf16 = adj_ref[...].astype(jnp.bfloat16)
    acc_ref[...] += jnp.dot(adj_bf16, neigh_feat_ref[...],
                            preferred_element_type=jnp.float32)

    @pl.when(k == pl.num_programs(1) - 1)
    def _():
        # mean aggregation: per-row 1/deg scale applied in f32 AFTER the matmul
        agg = acc_ref[...] * deg_inv_ref[...]

        # encoder: relu(self @ W_self + neigh_mean @ W_neigh), f32 accumulate
        h = jnp.dot(self_feat_ref[...], w_self_ref[...],
                    preferred_element_type=jnp.float32)
        h = h + jnp.dot(agg.astype(jnp.bfloat16), w_neigh_ref[...],
                        preferred_element_type=jnp.float32)
        embeds = jnp.maximum(h, 0.0)

        # classifier head: embeds.mm(weight), classes zero-padded to 128 lanes
        scores = jnp.dot(embeds.astype(jnp.bfloat16), w_cls_ref[...],
                         preferred_element_type=jnp.float32)
        col = jax.lax.broadcasted_iota(jnp.int32, scores.shape, 1)
        scores = jnp.where(col < num_classes, scores, NEG_BIG)

        # F.log_softmax(scores, dim=1), numerically stable
        m = jnp.max(scores, axis=1, keepdims=True)
        shifted = scores - m
        lse = jnp.log(jnp.sum(jnp.exp(shifted), axis=1, keepdims=True))
        out_ref[...] = shifted - lse


def prepare_graphsage_inputs(features, adj_binary, w_self, w_neigh, w_cls,
                             *, tile_n=256, tile_k=512):
    """One-time (per training run) padding + quantization -- hoisted out of
    the per-step hot path."""
    N, F = features.shape
    t = int(np.lcm(tile_n, tile_k))
    n_pad = int(pl.cdiv(N, t)) * t

    feat_p = jnp.zeros((n_pad, F), jnp.float32).at[:N].set(features)
    feat_p = feat_p.astype(jnp.bfloat16)

    # binary adjacency as int8: half the HBM bytes of bf16 on the dominant read
    adj_p = jnp.zeros((n_pad, n_pad), jnp.int8).at[:N, :N].set(
        adj_binary.astype(jnp.int8))

    deg = jnp.sum(adj_binary.astype(jnp.float32), axis=1, keepdims=True)
    deg_inv = 1.0 / jnp.maximum(deg, 1.0)
    deg_inv_p = jnp.ones((n_pad, 1), jnp.float32).at[:N].set(deg_inv)

    w_self_b = w_self.astype(jnp.bfloat16)
    w_neigh_b = w_neigh.astype(jnp.bfloat16)
    C = w_cls.shape[1]
    w_cls_p = jnp.zeros((w_cls.shape[0], C_PAD), jnp.float32).at[:, :C].set(w_cls)
    w_cls_p = w_cls_p.astype(jnp.bfloat16)

    return feat_p, adj_p, deg_inv_p, w_self_b, w_neigh_b, w_cls_p


def graphsage_forward(feat_p, adj_p, deg_inv_p, w_self_b, w_neigh_b, w_cls_p,
                      *, num_nodes, num_classes, tile_n=256, tile_k=512):
    n_pad, F = feat_p.shape
    D = w_self_b.shape[1]
    n_row = n_pad // tile_n
    n_col = n_pad // tile_k

    grid_spec = pltpu.PrefetchScalarGridSpec(
        num_scalar_prefetch=0,
        grid=(n_row, n_col),
        in_specs=[
            # self features for the current row tile (constant across k)
            pl.BlockSpec((tile_n, F), lambda i, k: (i, 0)),
            # int8 adjacency block -- the dominant, streamed HBM read
            pl.BlockSpec((tile_n, tile_k), lambda i, k: (i, k)),
            # neighbor features for the current column tile
            pl.BlockSpec((tile_k, F), lambda i, k: (k, 0)),
            # per-row 1/deg (mean-aggregation scale), f32
            pl.BlockSpec((tile_n, 1), lambda i, k: (i, 0)),
            # resident weights (constant index maps; tiny, left double-buffered)
            pl.BlockSpec((F, D), lambda i, k: (0, 0)),
            pl.BlockSpec((F, D), lambda i, k: (0, 0)),
            pl.BlockSpec((D, C_PAD), lambda i, k: (0, 0)),
        ],
        out_specs=pl.BlockSpec((tile_n, C_PAD), lambda i, k: (i, 0)),
        scratch_shapes=[pltpu.VMEM((tile_n, F), jnp.float32)],
    )

    flops = (2 * n_pad * n_pad * F            # aggregation
             + 2 * 2 * n_pad * F * D          # two encoder dots
             + 2 * n_pad * D * C_PAD)         # classifier
    bytes_accessed = (adj_p.size                       # int8
                      + 2 * feat_p.size * 2            # features read twice, bf16
                      + deg_inv_p.size * 4
                      + (w_self_b.size + w_neigh_b.size + w_cls_p.size) * 2
                      + n_pad * C_PAD * 4)
    cost = pl.CostEstimate(flops=flops,
                           transcendentals=n_pad * (C_PAD + 1),
                           bytes_accessed=bytes_accessed)

    out = pl.pallas_call(
        functools.partial(graphsage_kernel, num_classes=num_classes),
        out_shape=jax.ShapeDtypeStruct((n_pad, C_PAD), jnp.float32),
        grid_spec=grid_spec,
        compiler_params=pltpu.CompilerParams(
            dimension_semantics=("parallel", "arbitrary"),  # megacore rows
            vmem_limit_bytes=48 * 1024 * 1024,              # safe on v5e/v6e/v7x
        ),
        cost_estimate=cost,
    )(feat_p, adj_p, feat_p, deg_inv_p, w_self_b, w_neigh_b, w_cls_p)

    return out[:num_nodes, :num_classes]


def supervised_graphsage(features, adj_binary, w_self, w_neigh, w_cls,
                         *, tile_n=256, tile_k=512):
    prep = prepare_graphsage_inputs(features, adj_binary, w_self, w_neigh,
                                    w_cls, tile_n=tile_n, tile_k=tile_k)
    return graphsage_forward(*prep, num_nodes=features.shape[0],
                             num_classes=w_cls.shape[1],
                             tile_n=tile_n, tile_k=tile_k)


def reference(features, adj_binary, w_self, w_neigh, w_cls):
    # f32 reference on the same bf16-quantized operands the kernel consumes;
    # adjacency stays exact (0/1) and the 1/deg scale is exact f32.
    q = lambda a: a.astype(jnp.bfloat16).astype(jnp.float32)
    f = q(features)
    ws, wn, wc = q(w_self), q(w_neigh), q(w_cls)
    deg = jnp.maximum(jnp.sum(adj_binary, axis=1, keepdims=True), 1.0)
    agg = (adj_binary @ f) / deg
    embeds = jax.nn.relu(f @ ws + q(agg) @ wn)
    scores = q(embeds) @ wc
    return jax.nn.log_softmax(scores, axis=1)


def xavier_uniform(key, shape):
    fan_in, fan_out = shape
    bound = float(np.sqrt(6.0 / (fan_in + fan_out)))
    return jax.random.uniform(key, shape, jnp.float32, -bound, bound)


if __name__ == "__main__":
    # Small shapes: N nodes (non-multiple of tile to exercise padding),
    # F input feats, D embed dim, C classes.  Small tiles so the example
    # exercises a 2x2 grid with k-accumulation.
    N, F, D, C = 200, 64, 32, 7
    TILE_N, TILE_K = 128, 128

    key = jax.random.PRNGKey(0)
    k_feat, k_adj, k_ws, k_wn, k_wc = jax.random.split(key, 5)

    features = jax.random.normal(k_feat, (N, F), jnp.float32)

    # Random sparse BINARY adjacency with self loops; the kernel applies the
    # mean (1/deg) normalization itself.
    adj_binary = (jax.random.uniform(k_adj, (N, N)) < 0.1).astype(jnp.float32)
    adj_binary = jnp.maximum(adj_binary, jnp.eye(N, dtype=jnp.float32))

    # Encoder weights + classifier weight (xavier_uniform_, matching
    # nn.Parameter(enc.embed_dim, num_classes)).
    w_self = xavier_uniform(k_ws, (F, D))
    w_neigh = xavier_uniform(k_wn, (F, D))
    w_cls = xavier_uniform(k_wc, (D, C))

    # prepare once (training loop would reuse these), then run the kernel
    prep = prepare_graphsage_inputs(features, adj_binary, w_self, w_neigh,
                                    w_cls, tile_n=TILE_N, tile_k=TILE_K)
    out = graphsage_forward(*prep, num_nodes=N, num_classes=C,
                            tile_n=TILE_N, tile_k=TILE_K)
    out = jax.block_until_ready(out)

    ref = reference(features, adj_binary, w_self, w_neigh, w_cls)
    assert out.shape == (N, C)
    # bf16 MXU operands (features / weights / agg re-quantization) => ~1e-2 err
    assert np.allclose(np.asarray(out), np.asarray(ref), atol=3e-2, rtol=3e-2)

    print("KERNEL_OK")
</pallas_src>

<mosaic_0001>
module attributes {stable_mosaic.version = 11 : i64} {
  func.func @graphsage_kernel(%arg0: i32, %arg1: i32, %arg2: memref<128x64xbf16, #tpu.memory_space<vmem>>, %arg3: memref<128x128xi8, #tpu.memory_space<vmem>>, %arg4: memref<128x64xbf16, #tpu.memory_space<vmem>>, %arg5: memref<128x1xf32, #tpu.memory_space<vmem>>, %arg6: memref<64x32xbf16, #tpu.memory_space<vmem>>, %arg7: memref<64x32xbf16, #tpu.memory_space<vmem>>, %arg8: memref<32x128xbf16, #tpu.memory_space<vmem>>, %arg9: memref<128x128xf32, #tpu.memory_space<vmem>>, %arg10: memref<128x64xf32, #tpu.memory_space<vmem>>) attributes {dimension_semantics = [#tpu.dimension_semantics<parallel>, #tpu.dimension_semantics<arbitrary>], iteration_bounds = array<i64: 2, 2>, scalar_prefetch = 0 : i64, scratch_operands = 1 : i64, tpu.core_type = #tpu.core_type<tc>, window_params = [{transform_indices = @transform_0, window_bounds = array<i64: 128, 64>}, {transform_indices = @transform_1, window_bounds = array<i64: 128, 128>}, {transform_indices = @transform_2, window_bounds = array<i64: 128, 64>}, {transform_indices = @transform_3, window_bounds = array<i64: 128, 1>}, {pipeline_mode = #tpu.pipeline_mode<synchronous>, transform_indices = @transform_4, window_bounds = array<i64: 64, 32>}, {pipeline_mode = #tpu.pipeline_mode<synchronous>, transform_indices = @transform_5, window_bounds = array<i64: 64, 32>}, {pipeline_mode = #tpu.pipeline_mode<synchronous>, transform_indices = @transform_6, window_bounds = array<i64: 32, 128>}, {transform_indices = @transform_7, window_bounds = array<i64: 128, 128>}]} {
    %c0_i32 = arith.constant 0 : i32
    %0 = arith.cmpi eq, %arg1, %c0_i32 : i32
    %1 = arith.extui %0 : i1 to i32
    %c0_i32_0 = arith.constant 0 : i32
    %2 = arith.cmpi ne, %1, %c0_i32_0 : i32
    scf.if %2 {
      %cst_9 = arith.constant 0.000000e+00 : f32
      %13 = vector.broadcast %cst_9 : f32 to vector<128x64xf32>
      %c0_10 = arith.constant 0 : index
      %c0_11 = arith.constant 0 : index
      %14 = vector.load %arg10[%c0_10, %c0_11] : memref<128x64xf32, #tpu.memory_space<vmem>>, vector<128x64xf32>
      tpu.vector_store %arg10[%c0_10, %c0_11], %13 {strides = array<i32>} : memref<128x64xf32, #tpu.memory_space<vmem>>, vector<128x64xf32>,
    } else {
    }
    %c0 = arith.constant 0 : index
    %c0_1 = arith.constant 0 : index
    %3 = vector.load %arg3[%c0, %c0_1] : memref<128x128xi8, #tpu.memory_space<vmem>>, vector<128x128xi8>
    %4 = arith.sitofp %3 : vector<128x128xi8> to vector<128x128xbf16>
    %c0_2 = arith.constant 0 : index
    %c0_3 = arith.constant 0 : index
    %5 = vector.load %arg10[%c0_2, %c0_3] : memref<128x64xf32, #tpu.memory_space<vmem>>, vector<128x64xf32>
    %c0_4 = arith.constant 0 : index
    %c0_5 = arith.constant 0 : index
    %6 = vector.load %arg4[%c0_4, %c0_5] : memref<128x64xbf16, #tpu.memory_space<vmem>>, vector<128x64xbf16>
    %cst = arith.constant dense<0.000000e+00> : vector<128x64xf32>
    %7 = tpu.matmul %4, %6, %cst {dimension_numbers = #tpu.dot_dimension_numbers<[1], [0], [0], [1], [0, 0, 1, 1], [], []>} : vector<128x128xbf16>, vector<128x64xbf16>, vector<128x64xf32> -> vector<128x64xf32>
    %8 = arith.addf %5, %7 : vector<128x64xf32>
    %c0_6 = arith.constant 0 : index
    %c0_7 = arith.constant 0 : index
    %9 = vector.load %arg10[%c0_6, %c0_7] : memref<128x64xf32, #tpu.memory_space<vmem>>, vector<128x64xf32>
    tpu.vector_store %arg10[%c0_6, %c0_7], %8 {strides = array<i32>} : memref<128x64xf32, #tpu.memory_space<vmem>>, vector<128x64xf32>,
    %c1_i32 = arith.constant 1 : i32
    %10 = arith.cmpi eq, %arg1, %c1_i32 : i32
    %11 = arith.extui %10 : i1 to i32
    %c0_i32_8 = arith.constant 0 : i32
    %12 = arith.cmpi ne, %11, %c0_i32_8 : i32
    scf.if %12 {
      %c0_9 = arith.constant 0 : index
      %c0_10 = arith.constant 0 : index
      %13 = vector.load %arg10[%c0_9, %c0_10] : memref<128x64xf32, #tpu.memory_space<vmem>>, vector<128x64xf32>
      %c0_11 = arith.constant 0 : index
      %c0_12 = arith.constant 0 : index
      %14 = vector.load %arg5[%c0_11, %c0_12] : memref<128x1xf32, #tpu.memory_space<vmem>>, vector<128x1xf32>
      %15 = vector.broadcast %14 : vector<128x1xf32> to vector<128x64xf32>
      %16 = arith.mulf %13, %15 : vector<128x64xf32>
      %c0_13 = arith.constant 0 : index
      %c0_14 = arith.constant 0 : index
      %17 = vector.load %arg2[%c0_13, %c0_14] : memref<128x64xbf16, #tpu.memory_space<vmem>>, vector<128x64xbf16>
      %c0_15 = arith.constant 0 : index
      %c0_16 = arith.constant 0 : index
      %18 = vector.load %arg6[%c0_15, %c0_16] : memref<64x32xbf16, #tpu.memory_space<vmem>>, vector<64x32xbf16>
      %cst_17 = arith.constant dense<0.000000e+00> : vector<128x32xf32>
      %19 = tpu.matmul %17, %18, %cst_17 {dimension_numbers = #tpu.dot_dimension_numbers<[1], [0], [0], [1], [0, 0, 1, 1], [], []>} : vector<128x64xbf16>, vector<64x32xbf16>, vector<128x32xf32> -> vector<128x32xf32>
      %20 = arith.truncf %16 : vector<128x64xf32> to vector<128x64xbf16>
      %c0_18 = arith.constant 0 : index
      %c0_19 = arith.constant 0 : index
      %21 = vector.load %arg7[%c0_18, %c0_19] : memref<64x32xbf16, #tpu.memory_space<vmem>>, vector<64x32xbf16>
      %cst_20 = arith.constant dense<0.000000e+00> : vector<128x32xf32>
      %22 = tpu.matmul %20, %21, %cst_20 {dimension_numbers = #tpu.dot_dimension_numbers<[1], [0], [0], [1], [0, 0, 1, 1], [], []>} : vector<128x64xbf16>, vector<64x32xbf16>, vector<128x32xf32> -> vector<128x32xf32>
      %23 = arith.addf %19, %22 : vector<128x32xf32>
      %cst_21 = arith.constant 0.000000e+00 : f32
      %24 = vector.broadcast %cst_21 : f32 to vector<128x32xf32>
      %25 = arith.maximumf %23, %24 : vector<128x32xf32>
      %26 = arith.truncf %25 : vector<128x32xf32> to vector<128x32xbf16>
      %c0_22 = arith.constant 0 : index
      %c0_23 = arith.constant 0 : index
      %27 = vector.load %arg8[%c0_22, %c0_23] : memref<32x128xbf16, #tpu.memory_space<vmem>>, vector<32x128xbf16>
      %cst_24 = arith.constant dense<0.000000e+00> : vector<128x128xf32>
      %28 = tpu.matmul %26, %27, %cst_24 {dimension_numbers = #tpu.dot_dimension_numbers<[1], [0], [0], [1], [0, 0, 1, 1], [], []>} : vector<128x32xbf16>, vector<32x128xbf16>, vector<128x128xf32> -> vector<128x128xf32>
      %29 = tpu.iota {dimensions = array<i32: 1>} : vector<128x128xi32>
      %c7_i32 = arith.constant 7 : i32
      %30 = vector.broadcast %c7_i32 : i32 to vector<128x128xi32>
      %31 = arith.cmpi slt, %29, %30 : vector<128x128xi32>
      %cst_25 = arith.constant -1.000000e+30 : f32
      %32 = vector.broadcast %cst_25 : f32 to vector<128x128xf32>
      %33 = arith.select %31, %28, %32 : vector<128x128xi1>, vector<128x128xf32>
      %cst_26 = arith.constant dense<0xFF800000> : vector<128xf32>
      %34 = vector.multi_reduction <maximumf>, %33, %cst_26 [1] : vector<128x128xf32> to vector<128xf32>
      %35 = vector.shape_cast %34 : vector<128xf32> to vector<128x1xf32>
      %36 = vector.broadcast %35 : vector<128x1xf32> to vector<128x128xf32>
      %37 = arith.subf %33, %36 : vector<128x128xf32>
      %38 = math.exp %37 : vector<128x128xf32>
      %cst_27 = arith.constant dense<0.000000e+00> : vector<128xf32>
      %39 = vector.multi_reduction <add>, %38, %cst_27 [1] : vector<128x128xf32> to vector<128xf32>
      %40 = vector.shape_cast %39 : vector<128xf32> to vector<128x1xf32>
      %41 = math.log %40 : vector<128x1xf32>
      %42 = vector.broadcast %41 : vector<128x1xf32> to vector<128x128xf32>
      %43 = arith.subf %37, %42 : vector<128x128xf32>
      %c0_28 = arith.constant 0 : index
      %c0_29 = arith.constant 0 : index
      %44 = vector.load %arg9[%c0_28, %c0_29] : memref<128x128xf32, #tpu.memory_space<vmem>>, vector<128x128xf32>
      tpu.vector_store %arg9[%c0_28, %c0_29], %43 {strides = array<i32>} : memref<128x128xf32, #tpu.memory_space<vmem>>, vector<128x128xf32>,
    } else {
    }
    return
  }
  func.func @transform_0(%arg0: i32, %arg1: i32) -> (i32, i32) {
    %c0_i32 = arith.constant 0 : i32
    %c0_i32_0 = arith.constant 0 : i32
    return %arg0, %c0_i32 : i32, i32
  }
  func.func @transform_1(%arg0: i32, %arg1: i32) -> (i32, i32) {
    %c0_i32 = arith.constant 0 : i32
    return %arg0, %arg1 : i32, i32
  }
  func.func @transform_2(%arg0: i32, %arg1: i32) -> (i32, i32) {
    %c0_i32 = arith.constant 0 : i32
    %c0_i32_0 = arith.constant 0 : i32
    return %arg1, %c0_i32 : i32, i32
  }
  func.func @transform_3(%arg0: i32, %arg1: i32) -> (i32, i32) {
    %c0_i32 = arith.constant 0 : i32
    %c0_i32_0 = arith.constant 0 : i32
    return %arg0, %c0_i32 : i32, i32
  }
  func.func @transform_4(%arg0: i32, %arg1: i32) -> (i32, i32) {
    %c0_i32 = arith.constant 0 : i32
    %c0_i32_0 = arith.constant 0 : i32
    %c0_i32_1 = arith.constant 0 : i32
    return %c0_i32, %c0_i32_0 : i32, i32
  }
  func.func @transform_5(%arg0: i32, %arg1: i32) -> (i32, i32) {
    %c0_i32 = arith.constant 0 : i32
    %c0_i32_0 = arith.constant 0 : i32
    %c0_i32_1 = arith.constant 0 : i32
    return %c0_i32, %c0_i32_0 : i32, i32
  }
  func.func @transform_6(%arg0: i32, %arg1: i32) -> (i32, i32) {
    %c0_i32 = arith.constant 0 : i32
    %c0_i32_0 = arith.constant 0 : i32
    %c0_i32_1 = arith.constant 0 : i32
    return %c0_i32, %c0_i32_0 : i32, i32
  }
  func.func @transform_7(%arg0: i32, %arg1: i32) -> (i32, i32) {
    %c0_i32 = arith.constant 0 : i32
    %c0_i32_0 = arith.constant 0 : i32
    return %arg0, %c0_i32 : i32, i32
  }
}

</mosaic_0001>

<llo_original>
// kernel: tpu_custom_call.1
$region0: #{tpu_custom_call.1}
  #allocation0 [shape = 'u32[]', space=smem, size = 0x4, offset = 0x4, fixed_abs, tag = 'smem constant byte address 0x4 - core index']
  #allocation1 [shape = 'u32[144,128]{1,0:T(1,128)}', space=vmem, size = 0x12000, scoped, tag = 'internal scratch']
  #allocation2 [shape = 'f32[128,64]{1,0:T(8,128)}', space=vmem, size = 0x10000, scoped, tag = 'scratch operand']
  %s0 = inlined_call_operand.vmem [shape: bf16[256,64], index: 0, kind: input, shape index: {}]
  %s1 = inlined_call_operand.vmem [shape: s8[256,256], index: 1, kind: input, shape index: {}]
  %s2 = inlined_call_operand.vmem [shape: bf16[256,64], index: 2, kind: input, shape index: {}]
  %s3 = inlined_call_operand.vmem [shape: f32[256,1], index: 3, kind: input, shape index: {}]
  %s4 = inlined_call_operand.vmem [shape: bf16[64,32], index: 4, kind: input, shape index: {}]
  %s5 = inlined_call_operand.vmem [shape: bf16[64,32], index: 5, kind: input, shape index: {}]
  %s6 = inlined_call_operand.vmem [shape: bf16[32,128], index: 6, kind: input, shape index: {}]
  %s7 = inlined_call_operand.hbm [shape: f32[256,128], index: 7, kind: output, shape index: {}]
  %s8 = sld [smem:[#allocation0]]
  $region107: #{tpu_custom_call.1} parent=0
    _
  %s10 = ssub.s32 1, %s8
  %s11 = scalar_select 0, %s10, %s8
  $region1: #{tpu_custom_call.1} parent=0
    #allocation3 [shape = 'u8[32768]{0}', space=vmem, size = 0x8000, scoped, tag = 'input window, operand 1']
    #allocation4 [shape = 'u8[131072]{0}', space=vmem, size = 0x20000, scoped, tag = 'output window, operand 0']
    #allocation5 [shape = 's32[2]{0}', space=sflag, size = 0x8, scoped, tag = 'scoped memory for tpu_custom_call.1']
    %12 = vsyncpa [#allocation5], 0
    %s13 = scalar_lea.sflag [#allocation5], 1
    %14 = vsyncpa %s13, 0
    loop: start=0, step=1, limit=6
    $region2: #{tpu_custom_call.1} parent=1 // loop_pre_header
      _
    $region3: #{tpu_custom_call.1} parent=1 // loop_header
      %s16 = sphi 0, %s20
      %p17 = scmp.ge.s32.totalorder %s16, 6
      %s23 = sphi 0, %s35
      %s24 = sphi 0, %s31
      %s25 = sphi 0, %s23
      %s26 = sphi 0, %s24
      %s27 = sphi 0, %s25
      %s28 = sphi 0, %s26
      %s38 = sphi 0, %s40
      %s41 = sphi 0, %s38
      %s42 = sphi 0, %s41
      %s58 = sphi 0, %s42
      %s66 = sphi 0, %s68
      %s69 = sphi 0, %s66
      %s70 = sphi 0, %s69
      %s86 = sphi 0, %s70
      %s92 = sphi 0, %s94
      %s95 = sphi 0, %s92
      %s96 = sphi 0, %s95
      %s112 = sphi 0, %s96
      %s118 = sphi 0, %s120
      %s121 = sphi 0, %s118
      %s122 = sphi 0, %s121
      %s138 = sphi 0, %s122
      %s142 = sphi 0, %s142
      %s144 = sphi 0, %s142
      %s145 = sphi 0, %s144
      %s159 = sphi 0, %s145
      %s163 = sphi 0, %s163
      %s165 = sphi 0, %s163
      %s166 = sphi 0, %s165
      %s180 = sphi 0, %s166
      %s184 = sphi 0, %s184
      %s186 = sphi 0, %s184
      %s187 = sphi 0, %s186
      %s201 = sphi 0, %s187
      %s207 = sphi 0, %s209
      %s210 = sphi 0, %s207
      %s211 = sphi 0, %s210
      %s227 = sphi 0, %s211
    $region4: #{tpu_custom_call.1} parent=1 // loop_header_branch
      %19 = sbr.rel (%p17) target = $region8
    $region5: #{tpu_custom_call.1} parent=1 // loop_body
      %s21 = ssub.s32 %s16, 1
      %s22 = ssub.s32 %s16, 2
      %s29 = sadd.s32 1, %s24
      %p30 = scmp.ge.s32.totalorder %s29, 2
      %s31 = scalar_select %p30, 0, %s29
      %s32 = sadd.s32 1, %s23
      %s33 = scalar_select %p30, %s32, %s23
      %p34 = scmp.ge.s32.totalorder %s33, 2
      %s35 = scalar_select %p34, 0, %s33
      %s36 = ssub.s32 %s23, %s35
      %p37 = scmp.eq.s32.totalorder %s36, 0
      %s39 = sadd.s32 %s38, 1
      %s40 = scalar_select %p37, %s38, %s39
      %p43 = pneg %p37
      %p44 = scmp.eq.s32.totalorder %s16, 3
      %p45 = por %p43, %p44
      %p46 = scmp.ne.s32.totalorder %s38, %s41
      %p47 = scmp.eq.s32.totalorder %s16, 0
      %p48 = por %p46, %p47
      %p49 = scmp.ne.s32.totalorder %s38, %s41
      %p50 = scmp.eq.s32.totalorder %s21, 3
      %p51 = por %p49, %p50
      %p52 = scmp.ne.s32.totalorder %s41, %s42
      %p53 = scmp.eq.s32.totalorder %s21, 0
      %p54 = por %p52, %p53
      %p55 = scmp.ne.s32.totalorder %s41, %s42
      %p56 = scmp.eq.s32.totalorder %s22, 3
      %p57 = por %p55, %p56
      %p59 = scmp.ne.s32.totalorder %s42, %s58
      %p60 = scmp.eq.s32.totalorder %s22, 0
      %p61 = por %p59, %p60
      %s62 = ssub.s32 %s23, %s35
      %s63 = ssub.s32 %s24, %s31
      %s64 = sor.u32 %s62, %s63
      %p65 = scmp.eq.s32.totalorder %s64, 0
      %s67 = sadd.s32 %s66, 1
      %s68 = scalar_select %p65, %s66, %s67
      %p71 = pneg %p65
      %p72 = scmp.eq.s32.totalorder %s16, 3
      %p73 = por %p71, %p72
      %p74 = scmp.ne.s32.totalorder %s66, %s69
      %p75 = scmp.eq.s32.totalorder %s16, 0
      %p76 = por %p74, %p75
      %p77 = scmp.ne.s32.totalorder %s66, %s69
      %p78 = scmp.eq.s32.totalorder %s21, 3
      %p79 = por %p77, %p78
      %p80 = scmp.ne.s32.totalorder %s69, %s70
      %p81 = scmp.eq.s32.totalorder %s21, 0
      %p82 = por %p80, %p81
      %p83 = scmp.ne.s32.totalorder %s69, %s70
      %p84 = scmp.eq.s32.totalorder %s22, 3
      %p85 = por %p83, %p84
      %p87 = scmp.ne.s32.totalorder %s70, %s86
      %p88 = scmp.eq.s32.totalorder %s22, 0
      %p89 = por %p87, %p88
      %s90 = ssub.s32 %s24, %s31
      %p91 = scmp.eq.s32.totalorder %s90, 0
      %s93 = sadd.s32 %s92, 1
      %s94 = scalar_select %p91, %s92, %s93
      %p97 = pneg %p91
      %p98 = scmp.eq.s32.totalorder %s16, 3
      %p99 = por %p97, %p98
      %p100 = scmp.ne.s32.totalorder %s92, %s95
      %p101 = scmp.eq.s32.totalorder %s16, 0
      %p102 = por %p100, %p101
      %p103 = scmp.ne.s32.totalorder %s92, %s95
      %p104 = scmp.eq.s32.totalorder %s21, 3
      %p105 = por %p103, %p104
      %p106 = scmp.ne.s32.totalorder %s95, %s96
      %p107 = scmp.eq.s32.totalorder %s21, 0
      %p108 = por %p106, %p107
      %p109 = scmp.ne.s32.totalorder %s95, %s96
      %p110 = scmp.eq.s32.totalorder %s22, 3
      %p111 = por %p109, %p110
      %p113 = scmp.ne.s32.totalorder %s96, %s112
      %p114 = scmp.eq.s32.totalorder %s22, 0
      %p115 = por %p113, %p114
      %s116 = ssub.s32 %s23, %s35
      %p117 = scmp.eq.s32.totalorder %s116, 0
      %s119 = sadd.s32 %s118, 1
      %s120 = scalar_select %p117, %s118, %s119
      %p123 = pneg %p117
      %p124 = scmp.eq.s32.totalorder %s16, 3
      %p125 = por %p123, %p124
      %p126 = scmp.ne.s32.totalorder %s118, %s121
      %p127 = scmp.eq.s32.totalorder %s16, 0
      %p128 = por %p126, %p127
      %p129 = scmp.ne.s32.totalorder %s118, %s121
      %p130 = scmp.eq.s32.totalorder %s21, 3
      %p131 = por %p129, %p130
      %p132 = scmp.ne.s32.totalorder %s121, %s122
      %p133 = scmp.eq.s32.totalorder %s21, 0
      %p134 = por %p132, %p133
      %p135 = scmp.ne.s32.totalorder %s121, %s122
      %p136 = scmp.eq.s32.totalorder %s22, 3
      %p137 = por %p135, %p136
      %p139 = scmp.ne.s32.totalorder %s122, %s138
      %p140 = scmp.eq.s32.totalorder %s22, 0
      %p141 = por %p139, %p140
      %s143 = sadd.s32 %s142, 1
      %p146 = scmp.eq.s32.totalorder %s16, 3
      %p147 = scmp.ne.s32.totalorder %s142, %s144
      %p148 = scmp.eq.s32.totalorder %s16, 0
      %p149 = por %p147, %p148
      %p150 = scmp.ne.s32.totalorder %s142, %s144
      %p151 = scmp.eq.s32.totalorder %s21, 3
      %p152 = por %p150, %p151
      %p153 = scmp.ne.s32.totalorder %s144, %s145
      %p154 = scmp.eq.s32.totalorder %s21, 0
      %p155 = por %p153, %p154
      %p156 = scmp.ne.s32.totalorder %s144, %s145
      %p157 = scmp.eq.s32.totalorder %s22, 3
      %p158 = por %p156, %p157
      %p160 = scmp.ne.s32.totalorder %s145, %s159
      %p161 = scmp.eq.s32.totalorder %s22, 0
      %p162 = por %p160, %p161
      %s164 = sadd.s32 %s163, 1
      %p167 = scmp.eq.s32.totalorder %s16, 3
      %p168 = scmp.ne.s32.totalorder %s163, %s165
      %p169 = scmp.eq.s32.totalorder %s16, 0
      %p170 = por %p168, %p169
      %p171 = scmp.ne.s32.totalorder %s163, %s165
      %p172 = scmp.eq.s32.totalorder %s21, 3
      %p173 = por %p171, %p172
      %p174 = scmp.ne.s32.totalorder %s165, %s166
      %p175 = scmp.eq.s32.totalorder %s21, 0
      %p176 = por %p174, %p175
      %p177 = scmp.ne.s32.totalorder %s165, %s166
      %p178 = scmp.eq.s32.totalorder %s22, 3
      %p179 = por %p177, %p178
      %p181 = scmp.ne.s32.totalorder %s166, %s180
      %p182 = scmp.eq.s32.totalorder %s22, 0
      %p183 = por %p181, %p182
      %s185 = sadd.s32 %s184, 1
      %p188 = scmp.eq.s32.totalorder %s16, 3
      %p189 = scmp.ne.s32.totalorder %s184, %s186
      %p190 = scmp.eq.s32.totalorder %s16, 0
      %p191 = por %p189, %p190
      %p192 = scmp.ne.s32.totalorder %s184, %s186
      %p193 = scmp.eq.s32.totalorder %s21, 3
      %p194 = por %p192, %p193
      %p195 = scmp.ne.s32.totalorder %s186, %s187
      %p196 = scmp.eq.s32.totalorder %s21, 0
      %p197 = por %p195, %p196
      %p198 = scmp.ne.s32.totalorder %s186, %s187
      %p199 = scmp.eq.s32.totalorder %s22, 3
      %p200 = por %p198, %p199
      %p202 = scmp.ne.s32.totalorder %s187, %s201
      %p203 = scmp.eq.s32.totalorder %s22, 0
      %p204 = por %p202, %p203
      %s205 = ssub.s32 %s23, %s35
      %p206 = scmp.eq.s32.totalorder %s205, 0
      %s208 = sadd.s32 %s207, 1
      %s209 = scalar_select %p206, %s207, %s208
      %p212 = pneg %p206
      %p213 = scmp.eq.s32.totalorder %s16, 3
      %p214 = por %p212, %p213
      %p215 = scmp.ne.s32.totalorder %s207, %s210
      %p216 = scmp.eq.s32.totalorder %s16, 0
      %p217 = por %p215, %p216
      %p218 = scmp.ne.s32.totalorder %s207, %s210
      %p219 = scmp.eq.s32.totalorder %s21, 3
      %p220 = por %p218, %p219
      %p221 = scmp.ne.s32.totalorder %s210, %s211
      %p222 = scmp.eq.s32.totalorder %s21, 0
      %p223 = por %p221, %p222
      %p224 = scmp.ne.s32.totalorder %s210, %s211
      %p225 = scmp.eq.s32.totalorder %s22, 3
      %p226 = por %p224, %p225
      %p228 = scmp.ne.s32.totalorder %s211, %s227
      %p229 = scmp.eq.s32.totalorder %s22, 0
      %p230 = por %p228, %p229
      %p231 = scmp.le.s32.totalorder 1, %s16
      %p232 = scmp.lt.s32.totalorder %s16, 5
      %p233 = pnand %p231, %p232
      %p234 = pneg %p233
      // Predicated region
      $region9: #{tpu_custom_call.1} parent=5 // pred_check
        _
      $region10: #{tpu_custom_call.1} parent=5 // pred_check_branch
        %236 = sbr.rel (%p233) target = $region12
      $region11: #{tpu_custom_call.1} parent=5 // pred_region
        %s237 = ssub.s32 %s16, 1
        // Predicated region
        $region13: #{tpu_custom_call.1} parent=11 // pred_check
          %p238 = pneg %p155
        $region14: #{tpu_custom_call.1} parent=11 // pred_check_branch
          %240 = sbr.rel (%p238) target = $region16
        $region15: #{tpu_custom_call.1} parent=11 // pred_region
          _
        $region16: #{tpu_custom_call.1} parent=11 // pred_fallthru
          _
        // Predicated region
        $region17: #{tpu_custom_call.1} parent=11 // pred_check
          %p241 = pneg %p176
        $region18: #{tpu_custom_call.1} parent=11 // pred_check_branch
          %243 = sbr.rel (%p241) target = $region20
        $region19: #{tpu_custom_call.1} parent=11 // pred_region
          _
        $region20: #{tpu_custom_call.1} parent=11 // pred_fallthru
          _
        // Predicated region
        $region21: #{tpu_custom_call.1} parent=11 // pred_check
          %p244 = pneg %p197
        $region22: #{tpu_custom_call.1} parent=11 // pred_check_branch
          %246 = sbr.rel (%p244) target = $region24
        $region23: #{tpu_custom_call.1} parent=11 // pred_region
          _
        $region24: #{tpu_custom_call.1} parent=11 // pred_fallthru
          _
      $region12: #{tpu_custom_call.1} parent=5 // pred_fallthru
        _
      %p247 = scmp.lt.s32.totalorder %s16, 4
      // Predicated region
      $region25: #{tpu_custom_call.1} parent=5 // pred_check
        %p248 = pneg %p247
      $region26: #{tpu_custom_call.1} parent=5 // pred_check_branch
        %250 = sbr.rel (%p248) target = $region28
      $region27: #{tpu_custom_call.1} parent=5 // pred_region
        // Predicated region
        $region29: #{tpu_custom_call.1} parent=27 // pred_check
          %p251 = pneg %p48
        $region30: #{tpu_custom_call.1} parent=27 // pred_check_branch
          %253 = sbr.rel (%p251) target = $region32
        $region31: #{tpu_custom_call.1} parent=27 // pred_region
          %s254 = smul.u32 16, %s23
          %p255 = scmp.lt.s32.totalorder %s254, 31
          %s256 = scalar_select %p255, %s254, 31
          %s257 = smul.addr %s256, 4
          %s258 = scalar_lea.vmem %s0, %s257
          %s259 = smul.u32 16, %s23
        $region32: #{tpu_custom_call.1} parent=27 // pred_fallthru
          _
        // Predicated region
        $region33: #{tpu_custom_call.1} parent=27 // pred_check
          %p260 = pneg %p76
        $region34: #{tpu_custom_call.1} parent=27 // pred_check_branch
          %262 = sbr.rel (%p260) target = $region36
        $region35: #{tpu_custom_call.1} parent=27 // pred_region
          %s263 = sand.u32 %s66, 1
          %s264 = sand.u32 %s66, 1
          %s265 = smul.addr %s264, 32
          %s266 = scalar_lea.vmem [#allocation3], %s265
          %s267 = smul.u32 4, %s23
          %s268 = smul.addr %s267, 2
          %s269 = sadd.s32 %s24, %s268
          %s270 = smul.addr %s269, 8
          %s271 = scalar_lea.vmem %s1, %s270
          // Predicated region
          $region37: #{tpu_custom_call.1} parent=35 // pred_check
            _
          $region38: #{tpu_custom_call.1} parent=35 // pred_check_branch
            %273 = sbr.rel (0) target = $region40
          $region39: #{tpu_custom_call.1} parent=35 // pred_region
            // Predicated region
            $region41: #{tpu_custom_call.1} parent=39 // pred_check
              _
            $region42: #{tpu_custom_call.1} parent=39 // pred_check_branch
              %275 = sbr.rel (0) target = $region44
            $region43: #{tpu_custom_call.1} parent=39 // pred_region
              // Predicated region
              $region56: #{tpu_custom_call.1} parent=43 // pred_check
                _
              $region57: #{tpu_custom_call.1} parent=43 // pred_check_branch
                %297 = sbr.rel (0) target = $region59
              $region58: #{tpu_custom_call.1} parent=43 // pred_region
                loop: start=0, step=1, limit=1
                $region60: #{tpu_custom_call.1} parent=58 // loop_pre_header
                  _
                $region61: #{tpu_custom_call.1} parent=58 // loop_header
                  %s299 = sphi 0, %s303
                  %p300 = scmp.ge.s32.totalorder %s299, 1
                  %s304 = sphi %s271, %s271
                  %s305 = sphi %s266, %s266
                $region62: #{tpu_custom_call.1} parent=58 // loop_header_branch
                  %302 = sbr.rel (%p300) target = $region66
                $region63: #{tpu_custom_call.1} parent=58 // loop_body
                  %v306 = vld [vmem:[%s304] sm:$0xff]
                  %307 = vst [vmem:[%s305] sm:$0xff] %v306
                  %v308 = vld [vmem:[%s304 + $0x10] sm:$0xff]
                  %309 = vst [vmem:[%s305 + $0x8] sm:$0xff] %v308
                  %v310 = vld [vmem:[%s304 + $0x20] sm:$0xff]
                  %311 = vst [vmem:[%s305 + $0x10] sm:$0xff] %v310
                  %v312 = vld [vmem:[%s304 + $0x30] sm:$0xff]
                  %313 = vst [vmem:[%s305 + $0x18] sm:$0xff] %v312
                $region64: #{tpu_custom_call.1} parent=58 // loop_footer
                  %s303 = sadd.s32 1, %s299
                $region65: #{tpu_custom_call.1} parent=58 // loop_footer_branch
                  %298 = sbr.rel target = $region61
                $region66: #{tpu_custom_call.1} parent=58 // loop_exit
                  _
              $region59: #{tpu_custom_call.1} parent=43 // pred_fallthru
                _
              // Predicated region
              $region67: #{tpu_custom_call.1} parent=43 // pred_check
                _
              $region68: #{tpu_custom_call.1} parent=43 // pred_check_branch
                %315 = sbr.rel target = $region70
              $region69: #{tpu_custom_call.1} parent=43 // pred_region
                _
              $region70: #{tpu_custom_call.1} parent=43 // pred_fallthru
                _
            $region44: #{tpu_custom_call.1} parent=39 // pred_fallthru
              _
            // Predicated region
            $region45: #{tpu_custom_call.1} parent=39 // pred_check
              _
            $region46: #{tpu_custom_call.1} parent=39 // pred_check_branch
              %277 = sbr.rel target = $region48
            $region47: #{tpu_custom_call.1} parent=39 // pred_region
              %s279 = ssub.s32 256, 1
              loop: start=0, step=1, limit=1
              $region49: #{tpu_custom_call.1} parent=47 // loop_pre_header
                _
              $region50: #{tpu_custom_call.1} parent=47 // loop_header
                %s281 = sphi 0, %s285
                %p282 = scmp.ge.s32.totalorder %s281, 1
                %s286 = sphi %s271, %s271
                %s287 = sphi %s266, %s266
              $region51: #{tpu_custom_call.1} parent=47 // loop_header_branch
                %284 = sbr.rel (%p282) target = $region55
              $region52: #{tpu_custom_call.1} parent=47 // loop_body
                %v288 = vld [vmem:[%s286] sm:%s279]
                %289 = vst [vmem:[%s287] sm:%s279] %v288
                %v290 = vld [vmem:[%s286 + $0x10] sm:%s279]
                %291 = vst [vmem:[%s287 + $0x8] sm:%s279] %v290
                %v292 = vld [vmem:[%s286 + $0x20] sm:%s279]
                %293 = vst [vmem:[%s287 + $0x10] sm:%s279] %v292
                %v294 = vld [vmem:[%s286 + $0x30] sm:%s279]
                %295 = vst [vmem:[%s287 + $0x18] sm:%s279] %v294
              $region53: #{tpu_custom_call.1} parent=47 // loop_footer
                %s285 = sadd.s32 1, %s281
              $region54: #{tpu_custom_call.1} parent=47 // loop_footer_branch
                %280 = sbr.rel target = $region50
              $region55: #{tpu_custom_call.1} parent=47 // loop_exit
                _
            $region48: #{tpu_custom_call.1} parent=39 // pred_fallthru
              _
          $region40: #{tpu_custom_call.1} parent=35 // pred_fallthru
            _
          %316 = vnop
        $region36: #{tpu_custom_call.1} parent=27 // pred_fallthru
          _
        // Predicated region
        $region71: #{tpu_custom_call.1} parent=27 // pred_check
          %p317 = pneg %p102
        $region72: #{tpu_custom_call.1} parent=27 // pred_check_branch
          %319 = sbr.rel (%p317) target = $region74
        $region73: #{tpu_custom_call.1} parent=27 // pred_region
          %s320 = smul.u32 16, %s24
          %p321 = scmp.lt.s32.totalorder %s320, 31
          %s322 = scalar_select %p321, %s320, 31
          %s323 = smul.addr %s322, 4
          %s324 = scalar_lea.vmem %s2, %s323
          %s325 = smul.u32 16, %s24
        $region74: #{tpu_custom_call.1} parent=27 // pred_fallthru
          _
        // Predicated region
        $region75: #{tpu_custom_call.1} parent=27 // pred_check
          %p326 = pneg %p128
        $region76: #{tpu_custom_call.1} parent=27 // pred_check_branch
          %328 = sbr.rel (%p326) target = $region78
        $region77: #{tpu_custom_call.1} parent=27 // pred_region
          %s329 = smul.u32 16, %s23
          %p330 = scmp.lt.s32.totalorder %s329, 31
          %s331 = scalar_select %p330, %s329, 31
          %s332 = smul.addr %s331, 8
          %s333 = scalar_lea.vmem %s3, %s332
          %s334 = smul.u32 16, %s23
        $region78: #{tpu_custom_call.1} parent=27 // pred_fallthru
          _
      $region28: #{tpu_custom_call.1} parent=5 // pred_fallthru
        _
      %p335 = scmp.le.s32.totalorder 1, %s16
      %p336 = scmp.lt.s32.totalorder %s16, 5
      %p337 = pnand %p335, %p336
      %p338 = pneg %p337
      // Predicated region
      $region79: #{tpu_custom_call.1} parent=5 // pred_check
        _
      $region80: #{tpu_custom_call.1} parent=5 // pred_check_branch
        %340 = sbr.rel (%p337) target = $region82
      $region81: #{tpu_custom_call.1} parent=5 // pred_region
        %s341 = ssub.s32 %s16, 1
        %s342 = sand.u32 %s69, 1
        %s343 = sand.u32 %s69, 1
        %s344 = smul.addr %s343, 32
        %s345 = scalar_lea.vmem [#allocation3], %s344
        // Predicated region
        $region83: #{tpu_custom_call.1} parent=81 // pred_check
          %p346 = pneg %p82
        $region84: #{tpu_custom_call.1} parent=81 // pred_check_branch
          %348 = sbr.rel (%p346) target = $region86
        $region85: #{tpu_custom_call.1} parent=81 // pred_region
          _
        $region86: #{tpu_custom_call.1} parent=81 // pred_fallthru
          _
        %s349 = smul.u32 16, %s25
        %p350 = scmp.lt.s32.totalorder %s349, 31
        %s351 = scalar_select %p350, %s349, 31
        %s352 = smul.addr %s351, 4
        %s353 = scalar_lea.vmem %s0, %s352
        %p354 = pneg %p54
        %p355 = pneg %p51
        %s356 = sand.u32 %s69, 1
        %s357 = sand.u32 %s69, 1
        %s358 = smul.addr %s357, 32
        %s359 = scalar_lea.vmem [#allocation3], %s358
        %p360 = pneg %p82
        %p361 = pneg %p79
        %s362 = smul.u32 16, %s26
        %p363 = scmp.lt.s32.totalorder %s362, 31
        %s364 = scalar_select %p363, %s362, 31
        %s365 = smul.addr %s364, 4
        %s366 = scalar_lea.vmem %s2, %s365
        %p367 = pneg %p108
        %p368 = pneg %p105
        %s369 = smul.u32 16, %s25
        %p370 = scmp.lt.s32.totalorder %s369, 31
        %s371 = scalar_select %p370, %s369, 31
        %s372 = smul.addr %s371, 8
        %s373 = scalar_lea.vmem %s3, %s372
        %p374 = pneg %p134
        %p375 = pneg %p131
        %p376 = pneg %p155
        %p377 = pneg %p152
        %p378 = pneg %p176
        %p379 = pneg %p173
        %p380 = pneg %p197
        %p381 = pneg %p194
        %p382 = pneg %p223
        %p383 = pneg %p220
        %s384 = sand.u32 %s210, 1
        %s385 = scalar_lea.sflag [#allocation5], %s384
        %s386 = sand.u32 %s210, 1
        %s387 = smul.addr %s386, 128
        %s388 = scalar_lea.vmem [#allocation4], %s387
        %s389 = smul.u32 16, %s25
        %p390 = scmp.lt.s32.totalorder %s389, 31
        %s391 = scalar_select %p390, %s389, 31
        %s392 = smul.addr %s391, 4
        %s393 = scalar_lea.vmem %s0, %s392
        %s394 = smul.u32 16, %s25
        %s395 = smul.u32 4, %s25
        %s396 = smul.u32 16, %s26
        %p397 = scmp.lt.s32.totalorder %s396, 31
        %s398 = scalar_select %p397, %s396, 31
        %s399 = smul.addr %s398, 4
        %s400 = scalar_lea.vmem %s2, %s399
        %s401 = smul.u32 16, %s26
        %s402 = smul.u32 16, %s25
        %p403 = scmp.lt.s32.totalorder %s402, 31
        %s404 = scalar_select %p403, %s402, 31
        %s405 = smul.addr %s404, 8
        %s406 = scalar_lea.vmem %s3, %s405
        %s407 = smul.u32 16, %s25
        %s408 = smul.u32 16, %s25
        %p410 = scmp.eq.s32.totalorder %s26, 0
        // Predicated region
        $region87: #{tpu_custom_call.1} parent=81 // pred_check
          %p411 = pneg %p410
        $region88: #{tpu_custom_call.1} parent=81 // pred_check_branch
          %413 = sbr.rel (%p411) target = $region90
        $region89: #{tpu_custom_call.1} parent=81 // pred_region
          %vm414 = vcmask 523264
          %415 = vst.msk [vmem:[#allocation2] sm:$0xff] %vm414, 0.0
          %416 = vst.msk [vmem:[#allocation2 + $0x8] sm:$0xff] %vm414, 0.0
          %417 = vst.msk [vmem:[#allocation2 + $0x10] sm:$0xff] %vm414, 0.0
          %418 = vst.msk [vmem:[#allocation2 + $0x18] sm:$0xff] %vm414, 0.0
          %419 = vst.msk [vmem:[#allocation2 + $0x20] sm:$0xff] %vm414, 0.0
          %420 = vst.msk [vmem:[#allocation2 + $0x28] sm:$0xff] %vm414, 0.0
          %421 = vst.msk [vmem:[#allocation2 + $0x30] sm:$0xff] %vm414, 0.0
          %422 = vst.msk [vmem:[#allocation2 + $0x38] sm:$0xff] %vm414, 0.0
          %423 = vst.msk [vmem:[#allocation2 + $0x40] sm:$0xff] %vm414, 0.0
          %424 = vst.msk [vmem:[#allocation2 + $0x48] sm:$0xff] %vm414, 0.0
          %425 = vst.msk [vmem:[#allocation2 + $0x50] sm:$0xff] %vm414, 0.0
          %426 = vst.msk [vmem:[#allocation2 + $0x58] sm:$0xff] %vm414, 0.0
          %427 = vst.msk [vmem:[#allocation2 + $0x60] sm:$0xff] %vm414, 0.0
          %428 = vst.msk [vmem:[#allocation2 + $0x68] sm:$0xff] %vm414, 0.0
          %429 = vst.msk [vmem:[#allocation2 + $0x70] sm:$0xff] %vm414, 0.0
          %430 = vst.msk [vmem:[#allocation2 + $0x78] sm:$0xff] %vm414, 0.0
        $region90: #{tpu_custom_call.1} parent=81 // pred_fallthru
          _
        %v431 = vld [vmem:[%s345] sm:$0xff]
        %v432 = vld [vmem:[%s345 + $0x8] sm:$0xff]
        %v433 = vld [vmem:[%s345 + $0x10] sm:$0xff]
        %v434 = vld [vmem:[%s345 + $0x18] sm:$0xff]
        %v435 = vunpack.c.l.s8.bf16 %v431
        %v436 = vunpack.c.h.s8.bf16 %v431
        %v437 = vunpack.c.l.s8.bf16 %v432
        %v438 = vunpack.c.h.s8.bf16 %v432
        %v439 = vunpack.c.l.s8.bf16 %v433
        %v440 = vunpack.c.h.s8.bf16 %v433
        %v441 = vunpack.c.l.s8.bf16 %v434
        %v442 = vunpack.c.h.s8.bf16 %v434
        %v443 = vld [vmem:[#allocation2] sm:$0xff]
        %v444 = vld [vmem:[#allocation2 + $0x8] sm:$0xff]
        %v445 = vld [vmem:[#allocation2 + $0x10] sm:$0xff]
        %v446 = vld [vmem:[#allocation2 + $0x18] sm:$0xff]
        %v447 = vld [vmem:[#allocation2 + $0x20] sm:$0xff]
        %v448 = vld [vmem:[#allocation2 + $0x28] sm:$0xff]
        %v449 = vld [vmem:[#allocation2 + $0x30] sm:$0xff]
        %v450 = vld [vmem:[#allocation2 + $0x38] sm:$0xff]
        %v451 = vld [vmem:[#allocation2 + $0x40] sm:$0xff]
        %v452 = vld [vmem:[#allocation2 + $0x48] sm:$0xff]
        %v453 = vld [vmem:[#allocation2 + $0x50] sm:$0xff]
        %v454 = vld [vmem:[#allocation2 + $0x58] sm:$0xff]
        %v455 = vld [vmem:[#allocation2 + $0x60] sm:$0xff]
        %v456 = vld [vmem:[#allocation2 + $0x68] sm:$0xff]
        %v457 = vld [vmem:[#allocation2 + $0x70] sm:$0xff]
        %v458 = vld [vmem:[#allocation2 + $0x78] sm:$0xff]
        %v459 = vld [vmem:[%s400] sm:$0xf]
        %v460 = vld [vmem:[%s400 + $0x4] sm:$0xf]
        %v461 = vld [vmem:[%s400 + $0x8] sm:$0xf]
        %v462 = vld [vmem:[%s400 + $0xc] sm:$0xf]
        %v463 = vld [vmem:[%s400 + $0x10] sm:$0xf]
        %v464 = vld [vmem:[%s400 + $0x14] sm:$0xf]
        %v465 = vld [vmem:[%s400 + $0x18] sm:$0xf]
        %v466 = vld [vmem:[%s400 + $0x1c] sm:$0xf]
        %v467 = vld [vmem:[%s400 + $0x20] sm:$0xf]
        %v468 = vld [vmem:[%s400 + $0x24] sm:$0xf]
        %v469 = vld [vmem:[%s400 + $0x28] sm:$0xf]
        %v470 = vld [vmem:[%s400 + $0x2c] sm:$0xf]
        %v471 = vld [vmem:[%s400 + $0x30] sm:$0xf]
        %v472 = vld [vmem:[%s400 + $0x34] sm:$0xf]
        %v473 = vld [vmem:[%s400 + $0x38] sm:$0xf]
        %v474 = vld [vmem:[%s400 + $0x3c] sm:$0xf]
        %v491 = vunpack.c.l.b16 %v459
        %v492 = vunpack.c.l.b16 %v460
        %v493 = vunpack.c.l.b16 %v461
        %v494 = vunpack.c.l.b16 %v462
        %v495 = vunpack.c.l.b16 %v463
        %v496 = vunpack.c.l.b16 %v464
        %v497 = vunpack.c.l.b16 %v465
        %v498 = vunpack.c.l.b16 %v466
        %v499 = vunpack.c.l.b16 %v467
        %v500 = vunpack.c.l.b16 %v468
        %v501 = vunpack.c.l.b16 %v469
        %v502 = vunpack.c.l.b16 %v470
        %v503 = vunpack.c.l.b16 %v471
        %v504 = vunpack.c.l.b16 %v472
        %v505 = vunpack.c.l.b16 %v473
        %v506 = vunpack.c.l.b16 %v474
        %v507 = vpack.c.b16 %v492, %v491
        %v508 = vpack.c.b16 %v494, %v493
        %v509 = vpack.c.b16 %v496, %v495
        %v510 = vpack.c.b16 %v498, %v497
        %v511 = vpack.c.b16 %v500, %v499
        %v512 = vpack.c.b16 %v502, %v501
        %v513 = vpack.c.b16 %v504, %v503
        %v514 = vpack.c.b16 %v506, %v505
        %523 = vmatprep.subr.bf16.mxu0 0
        %524 = vmatpush1.bf16.msra.mxu0 %v514
        %525 = vmatprep.subr.bf16.mxu0 0
        %526 = vmatpush1.bf16.msra.mxu0 %v513
        %527 = vmatprep.subr.bf16.mxu0 0
        %528 = vmatpush1.bf16.msra.mxu0 %v512
        %529 = vmatprep.subr.bf16.mxu0 0
        %530 = vmatpush1.bf16.msra.mxu0 %v511
        %531 = vmatprep.subr.bf16.mxu0 0
        %532 = vmatpush1.bf16.msra.mxu0 %v510
        %533 = vmatprep.subr.bf16.mxu0 0
        %534 = vmatpush1.bf16.msra.mxu0 %v509
        %535 = vmatprep.subr.bf16.mxu0 0
        %536 = vmatpush1.bf16.msra.mxu0 %v508
        %537 = vmatprep.subr.bf16.mxu0 0
        %538 = vmatpush1.bf16.msra.mxu0 %v507
        %539 = vmatprep.subr.bf16.mxu0 0
        %540 = vmatpush2.bf16.msra.mxu0 0
        %541 = vmatprep.subr.bf16.mxu0 0
        %542 = vmatpush2.bf16.msra.mxu0 0
        %543 = vmatprep.subr.bf16.mxu0 0
        %544 = vmatpush2.bf16.msra.mxu0 0
        %545 = vmatprep.subr.bf16.mxu0 0
        %546 = vmatpush2.bf16.msra.mxu0 0
        %547 = vmatprep.subr.bf16.mxu0 0
        %548 = vmatpush2.bf16.msra.mxu0 0
        %549 = vmatprep.subr.bf16.mxu0 0
        %550 = vmatpush2.bf16.msra.mxu0 0
        %551 = vmatprep.subr.bf16.mxu0 0
        %552 = vmatpush2.bf16.msra.mxu0 0
        %553 = vmatprep.subr.bf16.mxu0 0
        %554 = vmatpush2.bf16.msra.mxu0 0
        %555 = vmatprep.mubr.bf16.mxu0 0
        %556 = vmatmul.mubr.bf16.gmra.mxu0 %v435
        %v557 = vpop.f32.mrf.mxu0
        %v558 = vadd.f32 0.0, %v557
        %v559 = vpop.f32.mrf.mxu0
        %v560 = vpop.f32.mrf.mxu0
        %v561 = vadd.f32 0.0, %v560
        %v562 = vpop.f32.mrf.mxu0
        %563 = vmatprep.mubr.bf16.mxu0 0
        %564 = vmatmul.mubr.bf16.gmra.mxu0 %v436
        %v565 = vpop.f32.mrf.mxu0
        %v566 = vadd.f32 0.0, %v565
        %v567 = vpop.f32.mrf.mxu0
        %v568 = vpop.f32.mrf.mxu0
        %v569 = vadd.f32 0.0, %v568
        %v570 = vpop.f32.mrf.mxu0
        %571 = vmatprep.mubr.bf16.mxu0 0
        %572 = vmatmul.mubr.bf16.gmra.mxu0 %v437
        %v573 = vpop.f32.mrf.mxu0
        %v574 = vadd.f32 0.0, %v573
        %v575 = vpop.f32.mrf.mxu0
        %v576 = vpop.f32.mrf.mxu0
        %v577 = vadd.f32 0.0, %v576
        %v578 = vpop.f32.mrf.mxu0
        %579 = vmatprep.mubr.bf16.mxu0 0
        %580 = vmatmul.mubr.bf16.gmra.mxu0 %v438
        %v581 = vpop.f32.mrf.mxu0
        %v582 = vadd.f32 0.0, %v581
        %v583 = vpop.f32.mrf.mxu0
        %v584 = vpop.f32.mrf.mxu0
        %v585 = vadd.f32 0.0, %v584
        %v586 = vpop.f32.mrf.mxu0
        %587 = vmatprep.mubr.bf16.mxu0 0
        %588 = vmatmul.mubr.bf16.gmra.mxu0 %v439
        %v589 = vpop.f32.mrf.mxu0
        %v590 = vadd.f32 0.0, %v589
        %v591 = vpop.f32.mrf.mxu0
        %v592 = vpop.f32.mrf.mxu0
        %v593 = vadd.f32 0.0, %v592
        %v594 = vpop.f32.mrf.mxu0
        %595 = vmatprep.mubr.bf16.mxu0 0
        %596 = vmatmul.mubr.bf16.gmra.mxu0 %v440
        %v597 = vpop.f32.mrf.mxu0
        %v598 = vadd.f32 0.0, %v597
        %v599 = vpop.f32.mrf.mxu0
        %v600 = vpop.f32.mrf.mxu0
        %v601 = vadd.f32 0.0, %v600
        %v602 = vpop.f32.mrf.mxu0
        %603 = vmatprep.mubr.bf16.mxu0 0
        %604 = vmatmul.mubr.bf16.gmra.mxu0 %v441
        %v605 = vpop.f32.mrf.mxu0
        %v606 = vadd.f32 0.0, %v605
        %v607 = vpop.f32.mrf.mxu0
        %v608 = vpop.f32.mrf.mxu0
        %v609 = vadd.f32 0.0, %v608
        %v610 = vpop.f32.mrf.mxu0
        %611 = vmatprep.mubr.bf16.mxu0 0
        %612 = vmatmul.mubr.bf16.gmra.mxu0 %v442
        %v613 = vpop.f32.mrf.mxu0
        %v614 = vadd.f32 0.0, %v613
        %v615 = vpop.f32.mrf.mxu0
        %v616 = vpop.f32.mrf.mxu0
        %v617 = vadd.f32 0.0, %v616
        %v618 = vpop.f32.mrf.mxu0
        %619 = vdwg.mxu0
        %v620 = vadd.f32 %v443, %v558
        %v621 = vadd.f32 %v444, %v561
        %v622 = vadd.f32 %v445, %v566
        %v623 = vadd.f32 %v446, %v569
        %v624 = vadd.f32 %v447, %v574
        %v625 = vadd.f32 %v448, %v577
        %v626 = vadd.f32 %v449, %v582
        %v627 = vadd.f32 %v450, %v585
        %v628 = vadd.f32 %v451, %v590
        %v629 = vadd.f32 %v452, %v593
        %v630 = vadd.f32 %v453, %v598
        %v631 = vadd.f32 %v454, %v601
        %v632 = vadd.f32 %v455, %v606
        %v633 = vadd.f32 %v456, %v609
        %v634 = vadd.f32 %v457, %v614
        %v635 = vadd.f32 %v458, %v617
        %vm636 = vcmask 523264
        %637 = vst.msk [vmem:[#allocation2] sm:$0xff] %vm636, %v620
        %638 = vst.msk [vmem:[#allocation2 + $0x8] sm:$0xff] %vm636, %v621
        %639 = vst.msk [vmem:[#allocation2 + $0x10] sm:$0xff] %vm636, %v622
        %640 = vst.msk [vmem:[#allocation2 + $0x18] sm:$0xff] %vm636, %v623
        %641 = vst.msk [vmem:[#allocation2 + $0x20] sm:$0xff] %vm636, %v624
        %642 = vst.msk [vmem:[#allocation2 + $0x28] sm:$0xff] %vm636, %v625
        %643 = vst.msk [vmem:[#allocation2 + $0x30] sm:$0xff] %vm636, %v626
        %644 = vst.msk [vmem:[#allocation2 + $0x38] sm:$0xff] %vm636, %v627
        %645 = vst.msk [vmem:[#allocation2 + $0x40] sm:$0xff] %vm636, %v628
        %646 = vst.msk [vmem:[#allocation2 + $0x48] sm:$0xff] %vm636, %v629
        %647 = vst.msk [vmem:[#allocation2 + $0x50] sm:$0xff] %vm636, %v630
        %648 = vst.msk [vmem:[#allocation2 + $0x58] sm:$0xff] %vm636, %v631
        %649 = vst.msk [vmem:[#allocation2 + $0x60] sm:$0xff] %vm636, %v632
        %650 = vst.msk [vmem:[#allocation2 + $0x68] sm:$0xff] %vm636, %v633
        %651 = vst.msk [vmem:[#allocation2 + $0x70] sm:$0xff] %vm636, %v634
        %652 = vst.msk [vmem:[#allocation2 + $0x78] sm:$0xff] %vm636, %v635
        %p653 = scmp.eq.s32.totalorder %s26, 1
        // Predicated region
        $region91: #{tpu_custom_call.1} parent=81 // pred_check
          %p654 = pneg %p653
        $region92: #{tpu_custom_call.1} parent=81 // pred_check_branch
          %656 = sbr.rel (%p654) target = $region94
        $region93: #{tpu_custom_call.1} parent=81 // pred_region
          %v657 = vld [vmem:[#allocation2] sm:$0xff]
          %v658 = vld [vmem:[#allocation2 + $0x8] sm:$0xff]
          %v659 = vld [vmem:[#allocation2 + $0x10] sm:$0xff]
          %v660 = vld [vmem:[#allocation2 + $0x18] sm:$0xff]
          %v661 = vld [vmem:[#allocation2 + $0x20] sm:$0xff]
          %v662 = vld [vmem:[#allocation2 + $0x28] sm:$0xff]
          %v663 = vld [vmem:[#allocation2 + $0x30] sm:$0xff]
          %v664 = vld [vmem:[#allocation2 + $0x38] sm:$0xff]
          %v665 = vld [vmem:[#allocation2 + $0x40] sm:$0xff]
          %v666 = vld [vmem:[#allocation2 + $0x48] sm:$0xff]
          %v667 = vld [vmem:[#allocation2 + $0x50] sm:$0xff]
          %v668 = vld [vmem:[#allocation2 + $0x58] sm:$0xff]
          %v669 = vld [vmem:[#allocation2 + $0x60] sm:$0xff]
          %v670 = vld [vmem:[#allocation2 + $0x68] sm:$0xff]
          %v671 = vld [vmem:[#allocation2 + $0x70] sm:$0xff]
          %v672 = vld [vmem:[#allocation2 + $0x78] sm:$0xff]
          %v673 = vld [vmem:[%s406] sm:$0xff]
          %v674 = vld [vmem:[%s406 + $0x8] sm:$0xff]
          %v675 = vld [vmem:[%s406 + $0x10] sm:$0xff]
          %v676 = vld [vmem:[%s406 + $0x18] sm:$0xff]
          %v677 = vld [vmem:[%s406 + $0x20] sm:$0xff]
          %v678 = vld [vmem:[%s406 + $0x28] sm:$0xff]
          %v679 = vld [vmem:[%s406 + $0x30] sm:$0xff]
          %v680 = vld [vmem:[%s406 + $0x38] sm:$0xff]
          %v681 = vld [vmem:[%s406 + $0x40] sm:$0xff]
          %v682 = vld [vmem:[%s406 + $0x48] sm:$0xff]
          %v683 = vld [vmem:[%s406 + $0x50] sm:$0xff]
          %v684 = vld [vmem:[%s406 + $0x58] sm:$0xff]
          %v685 = vld [vmem:[%s406 + $0x60] sm:$0xff]
          %v686 = vld [vmem:[%s406 + $0x68] sm:$0xff]
          %v687 = vld [vmem:[%s406 + $0x70] sm:$0xff]
          %v688 = vld [vmem:[%s406 + $0x78] sm:$0xff]
          %690 = vset.pattern.permute.xlu0 0
          %691 = vperm.xlu0 %690, %v673
          %v692 = vpop.permute.xlu0 %691
          %695 = vset.pattern.permute.xlu0 0
          %696 = vperm.xlu0 %695, %v674
          %v697 = vpop.permute.xlu0 %696
          %700 = vset.pattern.permute.xlu0 0
          %701 = vperm.xlu0 %700, %v675
          %v702 = vpop.permute.xlu0 %701
          %705 = vset.pattern.permute.xlu0 0
          %706 = vperm.xlu0 %705, %v676
          %v707 = vpop.permute.xlu0 %706
          %710 = vset.pattern.permute.xlu0 0
          %711 = vperm.xlu0 %710, %v677
          %v712 = vpop.permute.xlu0 %711
          %715 = vset.pattern.permute.xlu0 0
          %716 = vperm.xlu0 %715, %v678
          %v717 = vpop.permute.xlu0 %716
          %720 = vset.pattern.permute.xlu0 0
          %721 = vperm.xlu0 %720, %v679
          %v722 = vpop.permute.xlu0 %721
          %725 = vset.pattern.permute.xlu0 0
          %726 = vperm.xlu0 %725, %v680
          %v727 = vpop.permute.xlu0 %726
          %730 = vset.pattern.permute.xlu0 0
          %731 = vperm.xlu0 %730, %v681
          %v732 = vpop.permute.xlu0 %731
          %735 = vset.pattern.permute.xlu0 0
          %736 = vperm.xlu0 %735, %v682
          %v737 = vpop.permute.xlu0 %736
          %740 = vset.pattern.permute.xlu0 0
          %741 = vperm.xlu0 %740, %v683
          %v742 = vpop.permute.xlu0 %741
          %745 = vset.pattern.permute.xlu0 0
          %746 = vperm.xlu0 %745, %v684
          %v747 = vpop.permute.xlu0 %746
          %750 = vset.pattern.permute.xlu0 0
          %751 = vperm.xlu0 %750, %v685
          %v752 = vpop.permute.xlu0 %751
          %755 = vset.pattern.permute.xlu0 0
          %756 = vperm.xlu0 %755, %v686
          %v757 = vpop.permute.xlu0 %756
          %760 = vset.pattern.permute.xlu0 0
          %761 = vperm.xlu0 %760, %v687
          %v762 = vpop.permute.xlu0 %761
          %765 = vset.pattern.permute.xlu0 0
          %766 = vperm.xlu0 %765, %v688
          %v767 = vpop.permute.xlu0 %766
          %v769 = vmul.f32 %v657, %v692
          %v770 = vmul.f32 %v658, %v697
          %v771 = vmul.f32 %v659, %v702
          %v772 = vmul.f32 %v660, %v707
          %v773 = vmul.f32 %v661, %v712
          %v774 = vmul.f32 %v662, %v717
          %v775 = vmul.f32 %v663, %v722
          %v776 = vmul.f32 %v664, %v727
          %v777 = vmul.f32 %v665, %v732
          %v778 = vmul.f32 %v666, %v737
          %v779 = vmul.f32 %v667, %v742
          %v780 = vmul.f32 %v668, %v747
          %v781 = vmul.f32 %v669, %v752
          %v782 = vmul.f32 %v670, %v757
          %v783 = vmul.f32 %v671, %v762
          %v784 = vmul.f32 %v672, %v767
          %v785 = vld [vmem:[%s393] sm:$0xf]
          %v786 = vld [vmem:[%s393 + $0x4] sm:$0xf]
          %v787 = vld [vmem:[%s393 + $0x8] sm:$0xf]
          %v788 = vld [vmem:[%s393 + $0xc] sm:$0xf]
          %v789 = vld [vmem:[%s393 + $0x10] sm:$0xf]
          %v790 = vld [vmem:[%s393 + $0x14] sm:$0xf]
          %v791 = vld [vmem:[%s393 + $0x18] sm:$0xf]
          %v792 = vld [vmem:[%s393 + $0x1c] sm:$0xf]
          %v793 = vld [vmem:[%s393 + $0x20] sm:$0xf]
          %v794 = vld [vmem:[%s393 + $0x24] sm:$0xf]
          %v795 = vld [vmem:[%s393 + $0x28] sm:$0xf]
          %v796 = vld [vmem:[%s393 + $0x2c] sm:$0xf]
          %v797 = vld [vmem:[%s393 + $0x30] sm:$0xf]
          %v798 = vld [vmem:[%s393 + $0x34] sm:$0xf]
          %v799 = vld [vmem:[%s393 + $0x38] sm:$0xf]
          %v800 = vld [vmem:[%s393 + $0x3c] sm:$0xf]
          %v801 = vld [vmem:[%s4] sm:$0xf]
          %v802 = vld [vmem:[%s4 + $0x4] sm:$0xf]
          %v803 = vld [vmem:[%s4 + $0x8] sm:$0xf]
          %v804 = vld [vmem:[%s4 + $0xc] sm:$0xf]
          %v805 = vld [vmem:[%s4 + $0x10] sm:$0xf]
          %v806 = vld [vmem:[%s4 + $0x14] sm:$0xf]
          %v807 = vld [vmem:[%s4 + $0x18] sm:$0xf]
          %v808 = vld [vmem:[%s4 + $0x1c] sm:$0xf]
          %v809 = vpack.c.bf16 %v770, %v769
          %v810 = vpack.c.bf16 %v772, %v771
          %v811 = vpack.c.bf16 %v774, %v773
          %v812 = vpack.c.bf16 %v776, %v775
          %v813 = vpack.c.bf16 %v778, %v777
          %v814 = vpack.c.bf16 %v780, %v779
          %v815 = vpack.c.bf16 %v782, %v781
          %v816 = vpack.c.bf16 %v784, %v783
          %v817 = vld [vmem:[%s5] sm:$0xf]
          %v818 = vld [vmem:[%s5 + $0x4] sm:$0xf]
          %v819 = vld [vmem:[%s5 + $0x8] sm:$0xf]
          %v820 = vld [vmem:[%s5 + $0xc] sm:$0xf]
          %v821 = vld [vmem:[%s5 + $0x10] sm:$0xf]
          %v822 = vld [vmem:[%s5 + $0x14] sm:$0xf]
          %v823 = vld [vmem:[%s5 + $0x18] sm:$0xf]
          %v824 = vld [vmem:[%s5 + $0x1c] sm:$0xf]
          %v833 = vunpack.c.l.b16 %v817
          %v834 = vunpack.c.l.b16 %v818
          %v835 = vunpack.c.l.b16 %v819
          %v836 = vunpack.c.l.b16 %v820
          %v837 = vunpack.c.l.b16 %v821
          %v838 = vunpack.c.l.b16 %v822
          %v839 = vunpack.c.l.b16 %v823
          %v840 = vunpack.c.l.b16 %v824
          %v841 = vpack.c.b16 %v834, %v833
          %v842 = vpack.c.b16 %v836, %v835
          %v843 = vpack.c.b16 %v838, %v837
          %v844 = vpack.c.b16 %v840, %v839
          %v850 = vsel %vm636, %v809, 0
          %v853 = vsel %vm636, %v810, 0
          %v856 = vsel %vm636, %v811, 0
          %v859 = vsel %vm636, %v812, 0
          %v862 = vsel %vm636, %v813, 0
          %v865 = vsel %vm636, %v814, 0
          %v868 = vsel %vm636, %v815, 0
          %v871 = vsel %vm636, %v816, 0
          %873 = vmatprep.subr.bf16.mxu0 0
          %874 = vmatpush1.bf16.msra.mxu0 0
          %875 = vmatprep.subr.bf16.mxu0 0
          %876 = vmatpush1.bf16.msra.mxu0 0
          %877 = vmatprep.subr.bf16.mxu0 0
          %878 = vmatpush1.bf16.msra.mxu0 0
          %879 = vmatprep.subr.bf16.mxu0 0
          %880 = vmatpush1.bf16.msra.mxu0 0
          %881 = vmatprep.subr.bf16.mxu0 0
          %882 = vmatpush1.bf16.msra.mxu0 %v844
          %883 = vmatprep.subr.bf16.mxu0 0
          %884 = vmatpush1.bf16.msra.mxu0 %v843
          %885 = vmatprep.subr.bf16.mxu0 0
          %886 = vmatpush1.bf16.msra.mxu0 %v842
          %887 = vmatprep.subr.bf16.mxu0 0
          %888 = vmatpush1.bf16.msra.mxu0 %v841
          %889 = vmatprep.subr.bf16.mxu0 0
          %890 = vmatpush2.bf16.msra.mxu0 0
          %891 = vmatprep.subr.bf16.mxu0 0
          %892 = vmatpush2.bf16.msra.mxu0 0
          %893 = vmatprep.subr.bf16.mxu0 0
          %894 = vmatpush2.bf16.msra.mxu0 0
          %895 = vmatprep.subr.bf16.mxu0 0
          %896 = vmatpush2.bf16.msra.mxu0 0
          %897 = vmatprep.subr.bf16.mxu0 0
          %898 = vmatpush2.bf16.msra.mxu0 0
          %899 = vmatprep.subr.bf16.mxu0 0
          %900 = vmatpush2.bf16.msra.mxu0 0
          %901 = vmatprep.subr.bf16.mxu0 0
          %902 = vmatpush2.bf16.msra.mxu0 0
          %903 = vmatprep.subr.bf16.mxu0 0
          %904 = vmatpush2.bf16.msra.mxu0 0
          %905 = vmatprep.mubr.bf16.mxu0 0
          %906 = vmatmul.mubr.bf16.gmra.mxu0 %v850
          %v907 = vpop.f32.mrf.mxu0
          %v908 = vadd.f32 0.0, %v907
          %v909 = vpop.f32.mrf.mxu0
          %v910 = vpop.f32.mrf.mxu0
          %v911 = vadd.f32 0.0, %v910
          %v912 = vpop.f32.mrf.mxu0
          %913 = vmatprep.mubr.bf16.mxu0 0
          %914 = vmatmul.mubr.bf16.gmra.mxu0 %v853
          %v915 = vpop.f32.mrf.mxu0
          %v916 = vadd.f32 0.0, %v915
          %v917 = vpop.f32.mrf.mxu0
          %v918 = vpop.f32.mrf.mxu0
          %v919 = vadd.f32 0.0, %v918
          %v920 = vpop.f32.mrf.mxu0
          %921 = vmatprep.mubr.bf16.mxu0 0
          %922 = vmatmul.mubr.bf16.gmra.mxu0 %v856
          %v923 = vpop.f32.mrf.mxu0
          %v924 = vadd.f32 0.0, %v923
          %v925 = vpop.f32.mrf.mxu0
          %v926 = vpop.f32.mrf.mxu0
          %v927 = vadd.f32 0.0, %v926
          %v928 = vpop.f32.mrf.mxu0
          %929 = vmatprep.mubr.bf16.mxu0 0
          %930 = vmatmul.mubr.bf16.gmra.mxu0 %v859
          %v931 = vpop.f32.mrf.mxu0
          %v932 = vadd.f32 0.0, %v931
          %v933 = vpop.f32.mrf.mxu0
          %v934 = vpop.f32.mrf.mxu0
          %v935 = vadd.f32 0.0, %v934
          %v936 = vpop.f32.mrf.mxu0
          %937 = vmatprep.mubr.bf16.mxu0 0
          %938 = vmatmul.mubr.bf16.gmra.mxu0 %v862
          %v939 = vpop.f32.mrf.mxu0
          %v940 = vadd.f32 0.0, %v939
          %v941 = vpop.f32.mrf.mxu0
          %v942 = vpop.f32.mrf.mxu0
          %v943 = vadd.f32 0.0, %v942
          %v944 = vpop.f32.mrf.mxu0
          %945 = vmatprep.mubr.bf16.mxu0 0
          %946 = vmatmul.mubr.bf16.gmra.mxu0 %v865
          %v947 = vpop.f32.mrf.mxu0
          %v948 = vadd.f32 0.0, %v947
          %v949 = vpop.f32.mrf.mxu0
          %v950 = vpop.f32.mrf.mxu0
          %v951 = vadd.f32 0.0, %v950
          %v952 = vpop.f32.mrf.mxu0
          %953 = vmatprep.mubr.bf16.mxu0 0
          %954 = vmatmul.mubr.bf16.gmra.mxu0 %v868
          %v955 = vpop.f32.mrf.mxu0
          %v956 = vadd.f32 0.0, %v955
          %v957 = vpop.f32.mrf.mxu0
          %v958 = vpop.f32.mrf.mxu0
          %v959 = vadd.f32 0.0, %v958
          %v960 = vpop.f32.mrf.mxu0
          %961 = vmatprep.mubr.bf16.mxu0 0
          %962 = vmatmul.mubr.bf16.gmra.mxu0 %v871
          %v963 = vpop.f32.mrf.mxu0
          %v964 = vadd.f32 0.0, %v963
          %v965 = vpop.f32.mrf.mxu0
          %v966 = vpop.f32.mrf.mxu0
          %v967 = vadd.f32 0.0, %v966
          %v968 = vpop.f32.mrf.mxu0
          %969 = vdwg.mxu0
          %v986 = vunpack.c.l.b16 %v785
          %v987 = vunpack.c.l.b16 %v786
          %v988 = vunpack.c.l.b16 %v787
          %v989 = vunpack.c.l.b16 %v788
          %v990 = vunpack.c.l.b16 %v789
          %v991 = vunpack.c.l.b16 %v790
          %v992 = vunpack.c.l.b16 %v791
          %v993 = vunpack.c.l.b16 %v792
          %v994 = vunpack.c.l.b16 %v793
          %v995 = vunpack.c.l.b16 %v794
          %v996 = vunpack.c.l.b16 %v795
          %v997 = vunpack.c.l.b16 %v796
          %v998 = vunpack.c.l.b16 %v797
          %v999 = vunpack.c.l.b16 %v798
          %v1000 = vunpack.c.l.b16 %v799
          %v1001 = vunpack.c.l.b16 %v800
          %v1002 = vpack.c.b16 %v987, %v986
          %v1003 = vpack.c.b16 %v989, %v988
          %v1004 = vpack.c.b16 %v991, %v990
          %v1005 = vpack.c.b16 %v993, %v992
          %v1006 = vpack.c.b16 %v995, %v994
          %v1007 = vpack.c.b16 %v997, %v996
          %v1008 = vpack.c.b16 %v999, %v998
          %v1009 = vpack.c.b16 %v1001, %v1000
          %v1018 = vunpack.c.l.b16 %v801
          %v1019 = vunpack.c.l.b16 %v802
          %v1020 = vunpack.c.l.b16 %v803
          %v1021 = vunpack.c.l.b16 %v804
          %v1022 = vunpack.c.l.b16 %v805
          %v1023 = vunpack.c.l.b16 %v806
          %v1024 = vunpack.c.l.b16 %v807
          %v1025 = vunpack.c.l.b16 %v808
          %v1026 = vpack.c.b16 %v1019, %v1018
          %v1027 = vpack.c.b16 %v1021, %v1020
          %v1028 = vpack.c.b16 %v1023, %v1022
          %v1029 = vpack.c.b16 %v1025, %v1024
          %v1035 = vsel %vm636, %v1002, 0
          %v1038 = vsel %vm636, %v1003, 0
          %v1041 = vsel %vm636, %v1004, 0
          %v1044 = vsel %vm636, %v1005, 0
          %v1047 = vsel %vm636, %v1006, 0
          %v1050 = vsel %vm636, %v1007, 0
          %v1053 = vsel %vm636, %v1008, 0
          %v1056 = vsel %vm636, %v1009, 0
          %1058 = vmatprep.subr.bf16.mxu0 0
          %1059 = vmatpush1.bf16.msra.mxu0 0
          %1060 = vmatprep.subr.bf16.mxu0 0
          %1061 = vmatpush1.bf16.msra.mxu0 0
          %1062 = vmatprep.subr.bf16.mxu0 0
          %1063 = vmatpush1.bf16.msra.mxu0 0
          %1064 = vmatprep.subr.bf16.mxu0 0
          %1065 = vmatpush1.bf16.msra.mxu0 0
          %1066 = vmatprep.subr.bf16.mxu0 0
          %1067 = vmatpush1.bf16.msra.mxu0 %v1029
          %1068 = vmatprep.subr.bf16.mxu0 0
          %1069 = vmatpush1.bf16.msra.mxu0 %v1028
          %1070 = vmatprep.subr.bf16.mxu0 0
          %1071 = vmatpush1.bf16.msra.mxu0 %v1027
          %1072 = vmatprep.subr.bf16.mxu0 0
          %1073 = vmatpush1.bf16.msra.mxu0 %v1026
          %1074 = vmatprep.subr.bf16.mxu0 0
          %1075 = vmatpush2.bf16.msra.mxu0 0
          %1076 = vmatprep.subr.bf16.mxu0 0
          %1077 = vmatpush2.bf16.msra.mxu0 0
          %1078 = vmatprep.subr.bf16.mxu0 0
          %1079 = vmatpush2.bf16.msra.mxu0 0
          %1080 = vmatprep.subr.bf16.mxu0 0
          %1081 = vmatpush2.bf16.msra.mxu0 0
          %1082 = vmatprep.subr.bf16.mxu0 0
          %1083 = vmatpush2.bf16.msra.mxu0 0
          %1084 = vmatprep.subr.bf16.mxu0 0
          %1085 = vmatpush2.bf16.msra.mxu0 0
          %1086 = vmatprep.subr.bf16.mxu0 0
          %1087 = vmatpush2.bf16.msra.mxu0 0
          %1088 = vmatprep.subr.bf16.mxu0 0
          %1089 = vmatpush2.bf16.msra.mxu0 0
          %1090 = vmatprep.mubr.bf16.mxu0 0
          %1091 = vmatmul.mubr.bf16.gmra.mxu0 %v1035
          %v1092 = vpop.f32.mrf.mxu0
          %v1093 = vadd.f32 %v908, %v1092
          %v1094 = vpop.f32.mrf.mxu0
          %v1095 = vpop.f32.mrf.mxu0
          %v1096 = vadd.f32 %v911, %v1095
          %v1097 = vpop.f32.mrf.mxu0
          %1098 = vmatprep.mubr.bf16.mxu0 0
          %1099 = vmatmul.mubr.bf16.gmra.mxu0 %v1038
          %v1100 = vpop.f32.mrf.mxu0
          %v1101 = vadd.f32 %v916, %v1100
          %v1102 = vpop.f32.mrf.mxu0
          %v1103 = vpop.f32.mrf.mxu0
          %v1104 = vadd.f32 %v919, %v1103
          %v1105 = vpop.f32.mrf.mxu0
          %1106 = vmatprep.mubr.bf16.mxu0 0
          %1107 = vmatmul.mubr.bf16.gmra.mxu0 %v1041
          %v1108 = vpop.f32.mrf.mxu0
          %v1109 = vadd.f32 %v924, %v1108
          %v1110 = vpop.f32.mrf.mxu0
          %v1111 = vpop.f32.mrf.mxu0
          %v1112 = vadd.f32 %v927, %v1111
          %v1113 = vpop.f32.mrf.mxu0
          %1114 = vmatprep.mubr.bf16.mxu0 0
          %1115 = vmatmul.mubr.bf16.gmra.mxu0 %v1044
          %v1116 = vpop.f32.mrf.mxu0
          %v1117 = vadd.f32 %v932, %v1116
          %v1118 = vpop.f32.mrf.mxu0
          %v1119 = vpop.f32.mrf.mxu0
          %v1120 = vadd.f32 %v935, %v1119
          %v1121 = vpop.f32.mrf.mxu0
          %1122 = vmatprep.mubr.bf16.mxu0 0
          %1123 = vmatmul.mubr.bf16.gmra.mxu0 %v1047
          %v1124 = vpop.f32.mrf.mxu0
          %v1125 = vadd.f32 %v940, %v1124
          %v1126 = vpop.f32.mrf.mxu0
          %v1127 = vpop.f32.mrf.mxu0
          %v1128 = vadd.f32 %v943, %v1127
          %v1129 = vpop.f32.mrf.mxu0
          %1130 = vmatprep.mubr.bf16.mxu0 0
          %1131 = vmatmul.mubr.bf16.gmra.mxu0 %v1050
          %v1132 = vpop.f32.mrf.mxu0
          %v1133 = vadd.f32 %v948, %v1132
          %v1134 = vpop.f32.mrf.mxu0
          %v1135 = vpop.f32.mrf.mxu0
          %v1136 = vadd.f32 %v951, %v1135
          %v1137 = vpop.f32.mrf.mxu0
          %1138 = vmatprep.mubr.bf16.mxu0 0
          %1139 = vmatmul.mubr.bf16.gmra.mxu0 %v1053
          %v1140 = vpop.f32.mrf.mxu0
          %v1141 = vadd.f32 %v956, %v1140
          %v1142 = vpop.f32.mrf.mxu0
          %v1143 = vpop.f32.mrf.mxu0
          %v1144 = vadd.f32 %v959, %v1143
          %v1145 = vpop.f32.mrf.mxu0
          %1146 = vmatprep.mubr.bf16.mxu0 0
          %1147 = vmatmul.mubr.bf16.gmra.mxu0 %v1056
          %v1148 = vpop.f32.mrf.mxu0
          %v1149 = vadd.f32 %v964, %v1148
          %v1150 = vpop.f32.mrf.mxu0
          %v1151 = vpop.f32.mrf.mxu0
          %v1152 = vadd.f32 %v967, %v1151
          %v1153 = vpop.f32.mrf.mxu0
          %1154 = vdwg.mxu0
          %v1155 = vmax.f32 %v1093, 0.0
          %v1156 = vmax.f32 %v1096, 0.0
          %v1157 = vmax.f32 %v1101, 0.0
          %v1158 = vmax.f32 %v1104, 0.0
          %v1159 = vmax.f32 %v1109, 0.0
          %v1160 = vmax.f32 %v1112, 0.0
          %v1161 = vmax.f32 %v1117, 0.0
          %v1162 = vmax.f32 %v1120, 0.0
          %v1163 = vmax.f32 %v1125, 0.0
          %v1164 = vmax.f32 %v1128, 0.0
          %v1165 = vmax.f32 %v1133, 0.0
          %v1166 = vmax.f32 %v1136, 0.0
          %v1167 = vmax.f32 %v1141, 0.0
          %v1168 = vmax.f32 %v1144, 0.0
          %v1169 = vmax.f32 %v1149, 0.0
          %v1170 = vmax.f32 %v1152, 0.0
          %v1171 = vpack.c.bf16 %v1156, %v1155
          %v1172 = vpack.c.bf16 %v1158, %v1157
          %v1173 = vpack.c.bf16 %v1160, %v1159
          %v1174 = vpack.c.bf16 %v1162, %v1161
          %v1175 = vpack.c.bf16 %v1164, %v1163
          %v1176 = vpack.c.bf16 %v1166, %v1165
          %v1177 = vpack.c.bf16 %v1168, %v1167
          %v1178 = vpack.c.bf16 %v1170, %v1169
          %v1179 = vld [vmem:[%s6] sm:$0xf]
          %v1180 = vld [vmem:[%s6 + $0x4] sm:$0xf]
          %v1181 = vld [vmem:[%s6 + $0x8] sm:$0xf]
          %v1182 = vld [vmem:[%s6 + $0xc] sm:$0xf]
          %v1187 = vunpack.c.l.b16 %v1179
          %v1188 = vunpack.c.l.b16 %v1180
          %v1189 = vunpack.c.l.b16 %v1181
          %v1190 = vunpack.c.l.b16 %v1182
          %v1191 = vpack.c.b16 %v1188, %v1187
          %v1192 = vpack.c.b16 %v1190, %v1189
          %vm1195 = vcmask 261120
          %v1197 = vsel %vm1195, %v1171, 0
          %v1200 = vsel %vm1195, %v1172, 0
          %v1203 = vsel %vm1195, %v1173, 0
          %v1206 = vsel %vm1195, %v1174, 0
          %v1209 = vsel %vm1195, %v1175, 0
          %v1212 = vsel %vm1195, %v1176, 0
          %v1215 = vsel %vm1195, %v1177, 0
          %v1218 = vsel %vm1195, %v1178, 0
          %1220 = vmatprep.subr.bf16.mxu0 0
          %1221 = vmatpush1.bf16.msra.mxu0 0
          %1222 = vmatprep.subr.bf16.mxu0 0
          %1223 = vmatpush1.bf16.msra.mxu0 0
          %1224 = vmatprep.subr.bf16.mxu0 0
          %1225 = vmatpush1.bf16.msra.mxu0 0
          %1226 = vmatprep.subr.bf16.mxu0 0
          %1227 = vmatpush1.bf16.msra.mxu0 0
          %1228 = vmatprep.subr.bf16.mxu0 0
          %1229 = vmatpush1.bf16.msra.mxu0 0
          %1230 = vmatprep.subr.bf16.mxu0 0
          %1231 = vmatpush1.bf16.msra.mxu0 0
          %1232 = vmatprep.subr.bf16.mxu0 0
          %1233 = vmatpush1.bf16.msra.mxu0 %v1192
          %1234 = vmatprep.subr.bf16.mxu0 0
          %1235 = vmatpush1.bf16.msra.mxu0 %v1191
          %1236 = vmatprep.subr.bf16.mxu0 0
          %1237 = vmatpush2.bf16.msra.mxu0 0
          %1238 = vmatprep.subr.bf16.mxu0 0
          %1239 = vmatpush2.bf16.msra.mxu0 0
          %1240 = vmatprep.subr.bf16.mxu0 0
          %1241 = vmatpush2.bf16.msra.mxu0 0
          %1242 = vmatprep.subr.bf16.mxu0 0
          %1243 = vmatpush2.bf16.msra.mxu0 0
          %1244 = vmatprep.subr.bf16.mxu0 0
          %1245 = vmatpush2.bf16.msra.mxu0 0
          %1246 = vmatprep.subr.bf16.mxu0 0
          %1247 = vmatpush2.bf16.msra.mxu0 0
          %1248 = vmatprep.subr.bf16.mxu0 0
          %1249 = vmatpush2.bf16.msra.mxu0 0
          %1250 = vmatprep.subr.bf16.mxu0 0
          %1251 = vmatpush2.bf16.msra.mxu0 0
          %1252 = vmatprep.mubr.bf16.mxu0 0
          %1253 = vmatmul.mubr.bf16.gmra.mxu0 %v1197
          %v1254 = vpop.f32.mrf.mxu0
          %v1255 = vadd.f32 0.0, %v1254
          %v1256 = vpop.f32.mrf.mxu0
          %v1257 = vpop.f32.mrf.mxu0
          %v1258 = vadd.f32 0.0, %v1257
          %v1259 = vpop.f32.mrf.mxu0
          %1260 = vmatprep.mubr.bf16.mxu0 0
          %1261 = vmatmul.mubr.bf16.gmra.mxu0 %v1200
          %v1262 = vpop.f32.mrf.mxu0
          %v1263 = vadd.f32 0.0, %v1262
          %v1264 = vpop.f32.mrf.mxu0
          %v1265 = vpop.f32.mrf.mxu0
          %v1266 = vadd.f32 0.0, %v1265
          %v1267 = vpop.f32.mrf.mxu0
          %1268 = vmatprep.mubr.bf16.mxu0 0
          %1269 = vmatmul.mubr.bf16.gmra.mxu0 %v1203
          %v1270 = vpop.f32.mrf.mxu0
          %v1271 = vadd.f32 0.0, %v1270
          %v1272 = vpop.f32.mrf.mxu0
          %v1273 = vpop.f32.mrf.mxu0
          %v1274 = vadd.f32 0.0, %v1273
          %v1275 = vpop.f32.mrf.mxu0
          %1276 = vmatprep.mubr.bf16.mxu0 0
          %1277 = vmatmul.mubr.bf16.gmra.mxu0 %v1206
          %v1278 = vpop.f32.mrf.mxu0
          %v1279 = vadd.f32 0.0, %v1278
          %v1280 = vpop.f32.mrf.mxu0
          %v1281 = vpop.f32.mrf.mxu0
          %v1282 = vadd.f32 0.0, %v1281
          %v1283 = vpop.f32.mrf.mxu0
          %1284 = vmatprep.mubr.bf16.mxu0 0
          %1285 = vmatmul.mubr.bf16.gmra.mxu0 %v1209
          %v1286 = vpop.f32.mrf.mxu0
          %v1287 = vadd.f32 0.0, %v1286
          %v1288 = vpop.f32.mrf.mxu0
          %v1289 = vpop.f32.mrf.mxu0
          %v1290 = vadd.f32 0.0, %v1289
          %v1291 = vpop.f32.mrf.mxu0
          %1292 = vmatprep.mubr.bf16.mxu0 0
          %1293 = vmatmul.mubr.bf16.gmra.mxu0 %v1212
          %v1294 = vpop.f32.mrf.mxu0
          %v1295 = vadd.f32 0.0, %v1294
          %v1296 = vpop.f32.mrf.mxu0
          %v1297 = vpop.f32.mrf.mxu0
          %v1298 = vadd.f32 0.0, %v1297
          %v1299 = vpop.f32.mrf.mxu0
          %1300 = vmatprep.mubr.bf16.mxu0 0
          %1301 = vmatmul.mubr.bf16.gmra.mxu0 %v1215
          %v1302 = vpop.f32.mrf.mxu0
          %v1303 = vadd.f32 0.0, %v1302
          %v1304 = vpop.f32.mrf.mxu0
          %v1305 = vpop.f32.mrf.mxu0
          %v1306 = vadd.f32 0.0, %v1305
          %v1307 = vpop.f32.mrf.mxu0
          %1308 = vmatprep.mubr.bf16.mxu0 0
          %1309 = vmatmul.mubr.bf16.gmra.mxu0 %v1218
          %v1310 = vpop.f32.mrf.mxu0
          %v1311 = vadd.f32 0.0, %v1310
          %v1312 = vpop.f32.mrf.mxu0
          %v1313 = vpop.f32.mrf.mxu0
          %v1314 = vadd.f32 0.0, %v1313
          %v1315 = vpop.f32.mrf.mxu0
          %1316 = vdwg.mxu0
          %v1317 = vlaneseq
          %v1318 = vand.u32 %v1317, 127
          %vm1319 = vcmp.lt.s32.totalorder %v1318, 7
          %v1320 = vsel %vm1319, %v1255, -1e+30
          %v1321 = vsel %vm1319, %v1258, -1e+30
          %v1322 = vsel %vm1319, %v1263, -1e+30
          %v1323 = vsel %vm1319, %v1266, -1e+30
          %v1324 = vsel %vm1319, %v1271, -1e+30
          %v1325 = vsel %vm1319, %v1274, -1e+30
          %v1326 = vsel %vm1319, %v1279, -1e+30
          %v1327 = vsel %vm1319, %v1282, -1e+30
          %v1328 = vsel %vm1319, %v1287, -1e+30
          %v1329 = vsel %vm1319, %v1290, -1e+30
          %v1330 = vsel %vm1319, %v1295, -1e+30
          %v1331 = vsel %vm1319, %v1298, -1e+30
          %v1332 = vsel %vm1319, %v1303, -1e+30
          %v1333 = vsel %vm1319, %v1306, -1e+30
          %v1334 = vsel %vm1319, %v1311, -1e+30
          %v1335 = vsel %vm1319, %v1314, -1e+30
          %1336 = vmax.xlane.f32.xlu0 %v1320
          %v1337 = vpop.xlane.xlu0 %1336
          %1338 = vmax.xlane.f32.xlu0 %v1321
          %v1339 = vpop.xlane.xlu0 %1338
          %1340 = vmax.xlane.f32.xlu0 %v1322
          %v1341 = vpop.xlane.xlu0 %1340
          %1342 = vmax.xlane.f32.xlu0 %v1323
          %v1343 = vpop.xlane.xlu0 %1342
          %1344 = vmax.xlane.f32.xlu0 %v1324
          %v1345 = vpop.xlane.xlu0 %1344
          %1346 = vmax.xlane.f32.xlu0 %v1325
          %v1347 = vpop.xlane.xlu0 %1346
          %1348 = vmax.xlane.f32.xlu0 %v1326
          %v1349 = vpop.xlane.xlu0 %1348
          %1350 = vmax.xlane.f32.xlu0 %v1327
          %v1351 = vpop.xlane.xlu0 %1350
          %1352 = vmax.xlane.f32.xlu0 %v1328
          %v1353 = vpop.xlane.xlu0 %1352
          %1354 = vmax.xlane.f32.xlu0 %v1329
          %v1355 = vpop.xlane.xlu0 %1354
          %1356 = vmax.xlane.f32.xlu0 %v1330
          %v1357 = vpop.xlane.xlu0 %1356
          %1358 = vmax.xlane.f32.xlu0 %v1331
          %v1359 = vpop.xlane.xlu0 %1358
          %1360 = vmax.xlane.f32.xlu0 %v1332
          %v1361 = vpop.xlane.xlu0 %1360
          %1362 = vmax.xlane.f32.xlu0 %v1333
          %v1363 = vpop.xlane.xlu0 %1362
          %1364 = vmax.xlane.f32.xlu0 %v1334
          %v1365 = vpop.xlane.xlu0 %1364
          %1366 = vmax.xlane.f32.xlu0 %v1335
          %v1367 = vpop.xlane.xlu0 %1366
          %v1368 = vsub.f32 %v1320, %v1337
          %v1369 = vsub.f32 %v1321, %v1339
          %v1370 = vsub.f32 %v1322, %v1341
          %v1371 = vsub.f32 %v1323, %v1343
          %v1372 = vsub.f32 %v1324, %v1345
          %v1373 = vsub.f32 %v1325, %v1347
          %v1374 = vsub.f32 %v1326, %v1349
          %v1375 = vsub.f32 %v1327, %v1351
          %v1376 = vsub.f32 %v1328, %v1353
          %v1377 = vsub.f32 %v1329, %v1355
          %v1378 = vsub.f32 %v1330, %v1357
          %v1379 = vsub.f32 %v1331, %v1359
          %v1380 = vsub.f32 %v1332, %v1361
          %v1381 = vsub.f32 %v1333, %v1363
          %v1382 = vsub.f32 %v1334, %v1365
          %v1383 = vsub.f32 %v1335, %v1367
          %v1384 = vmul.f32 %v1368, 1.442695
          %v1385 = vpow.pop %v1384
          %v1386 = vmul.f32 %v1369, 1.442695
          %v1387 = vpow.pop %v1386
          %v1388 = vmul.f32 %v1370, 1.442695
          %v1389 = vpow.pop %v1388
          %v1390 = vmul.f32 %v1371, 1.442695
          %v1391 = vpow.pop %v1390
          %v1392 = vmul.f32 %v1372, 1.442695
          %v1393 = vpow.pop %v1392
          %v1394 = vmul.f32 %v1373, 1.442695
          %v1395 = vpow.pop %v1394
          %v1396 = vmul.f32 %v1374, 1.442695
          %v1397 = vpow.pop %v1396
          %v1398 = vmul.f32 %v1375, 1.442695
          %v1399 = vpow.pop %v1398
          %v1400 = vmul.f32 %v1376, 1.442695
          %v1401 = vpow.pop %v1400
          %v1402 = vmul.f32 %v1377, 1.442695
          %v1403 = vpow.pop %v1402
          %v1404 = vmul.f32 %v1378, 1.442695
          %v1405 = vpow.pop %v1404
          %v1406 = vmul.f32 %v1379, 1.442695
          %v1407 = vpow.pop %v1406
          %v1408 = vmul.f32 %v1380, 1.442695
          %v1409 = vpow.pop %v1408
          %v1410 = vmul.f32 %v1381, 1.442695
          %v1411 = vpow.pop %v1410
          %v1412 = vmul.f32 %v1382, 1.442695
          %v1413 = vpow.pop %v1412
          %v1414 = vmul.f32 %v1383, 1.442695
          %v1415 = vpow.pop %v1414
          %1416 = vadd.xlane.f32.xlu0 %v1385
          %v1417 = vpop.xlane.xlu0 %1416
          %1418 = vadd.xlane.f32.xlu0 %v1387
          %v1419 = vpop.xlane.xlu0 %1418
          %1420 = vadd.xlane.f32.xlu0 %v1389
          %v1421 = vpop.xlane.xlu0 %1420
          %1422 = vadd.xlane.f32.xlu0 %v1391
          %v1423 = vpop.xlane.xlu0 %1422
          %1424 = vadd.xlane.f32.xlu0 %v1393
          %v1425 = vpop.xlane.xlu0 %1424
          %1426 = vadd.xlane.f32.xlu0 %v1395
          %v1427 = vpop.xlane.xlu0 %1426
          %1428 = vadd.xlane.f32.xlu0 %v1397
          %v1429 = vpop.xlane.xlu0 %1428
          %1430 = vadd.xlane.f32.xlu0 %v1399
          %v1431 = vpop.xlane.xlu0 %1430
          %1432 = vadd.xlane.f32.xlu0 %v1401
          %v1433 = vpop.xlane.xlu0 %1432
          %1434 = vadd.xlane.f32.xlu0 %v1403
          %v1435 = vpop.xlane.xlu0 %1434
          %1436 = vadd.xlane.f32.xlu0 %v1405
          %v1437 = vpop.xlane.xlu0 %1436
          %1438 = vadd.xlane.f32.xlu0 %v1407
          %v1439 = vpop.xlane.xlu0 %1438
          %1440 = vadd.xlane.f32.xlu0 %v1409
          %v1441 = vpop.xlane.xlu0 %1440
          %1442 = vadd.xlane.f32.xlu0 %v1411
          %v1443 = vpop.xlane.xlu0 %1442
          %1444 = vadd.xlane.f32.xlu0 %v1413
          %v1445 = vpop.xlane.xlu0 %1444
          %1446 = vadd.xlane.f32.xlu0 %v1415
          %v1447 = vpop.xlane.xlu0 %1446
          %v1448 = vlog2.pop %v1417
          %v1449 = vmul.f32 %v1448, 0.6931472
          %v1450 = vlog2.pop %v1419
          %v1451 = vmul.f32 %v1450, 0.6931472
          %v1452 = vlog2.pop %v1421
          %v1453 = vmul.f32 %v1452, 0.6931472
          %v1454 = vlog2.pop %v1423
          %v1455 = vmul.f32 %v1454, 0.6931472
          %v1456 = vlog2.pop %v1425
          %v1457 = vmul.f32 %v1456, 0.6931472
          %v1458 = vlog2.pop %v1427
          %v1459 = vmul.f32 %v1458, 0.6931472
          %v1460 = vlog2.pop %v1429
          %v1461 = vmul.f32 %v1460, 0.6931472
          %v1462 = vlog2.pop %v1431
          %v1463 = vmul.f32 %v1462, 0.6931472
          %v1464 = vlog2.pop %v1433
          %v1465 = vmul.f32 %v1464, 0.6931472
          %v1466 = vlog2.pop %v1435
          %v1467 = vmul.f32 %v1466, 0.6931472
          %v1468 = vlog2.pop %v1437
          %v1469 = vmul.f32 %v1468, 0.6931472
          %v1470 = vlog2.pop %v1439
          %v1471 = vmul.f32 %v1470, 0.6931472
          %v1472 = vlog2.pop %v1441
          %v1473 = vmul.f32 %v1472, 0.6931472
          %v1474 = vlog2.pop %v1443
          %v1475 = vmul.f32 %v1474, 0.6931472
          %v1476 = vlog2.pop %v1445
          %v1477 = vmul.f32 %v1476, 0.6931472
          %v1478 = vlog2.pop %v1447
          %v1479 = vmul.f32 %v1478, 0.6931472
          %v1480 = vsub.f32 %v1368, %v1449
          %v1481 = vsub.f32 %v1369, %v1451
          %v1482 = vsub.f32 %v1370, %v1453
          %v1483 = vsub.f32 %v1371, %v1455
          %v1484 = vsub.f32 %v1372, %v1457
          %v1485 = vsub.f32 %v1373, %v1459
          %v1486 = vsub.f32 %v1374, %v1461
          %v1487 = vsub.f32 %v1375, %v1463
          %v1488 = vsub.f32 %v1376, %v1465
          %v1489 = vsub.f32 %v1377, %v1467
          %v1490 = vsub.f32 %v1378, %v1469
          %v1491 = vsub.f32 %v1379, %v1471
          %v1492 = vsub.f32 %v1380, %v1473
          %v1493 = vsub.f32 %v1381, %v1475
          %v1494 = vsub.f32 %v1382, %v1477
          %v1495 = vsub.f32 %v1383, %v1479
          %1496 = vst [vmem:[%s388] sm:$0xff] %v1480
          %1497 = vst [vmem:[%s388 + $0x8] sm:$0xff] %v1481
          %1498 = vst [vmem:[%s388 + $0x10] sm:$0xff] %v1482
          %1499 = vst [vmem:[%s388 + $0x18] sm:$0xff] %v1483
          %1500 = vst [vmem:[%s388 + $0x20] sm:$0xff] %v1484
          %1501 = vst [vmem:[%s388 + $0x28] sm:$0xff] %v1485
          %1502 = vst [vmem:[%s388 + $0x30] sm:$0xff] %v1486
          %1503 = vst [vmem:[%s388 + $0x38] sm:$0xff] %v1487
          %1504 = vst [vmem:[%s388 + $0x40] sm:$0xff] %v1488
          %1505 = vst [vmem:[%s388 + $0x48] sm:$0xff] %v1489
          %1506 = vst [vmem:[%s388 + $0x50] sm:$0xff] %v1490
          %1507 = vst [vmem:[%s388 + $0x58] sm:$0xff] %v1491
          %1508 = vst [vmem:[%s388 + $0x60] sm:$0xff] %v1492
          %1509 = vst [vmem:[%s388 + $0x68] sm:$0xff] %v1493
          %1510 = vst [vmem:[%s388 + $0x70] sm:$0xff] %v1494
          %1511 = vst [vmem:[%s388 + $0x78] sm:$0xff] %v1495
        $region94: #{tpu_custom_call.1} parent=81 // pred_fallthru
          _
        %s1512 = sand.u32 %s210, 1
        %s1513 = scalar_lea.sflag [#allocation5], %s1512
        %s1514 = sand.u32 %s210, 1
        %s1515 = smul.addr %s1514, 128
        %s1516 = scalar_lea.vmem [#allocation4], %s1515
        // Predicated region
        $region95: #{tpu_custom_call.1} parent=81 // pred_check
          %p1517 = pneg %p220
        $region96: #{tpu_custom_call.1} parent=81 // pred_check_branch
          %1519 = sbr.rel (%p1517) target = $region98
        $region97: #{tpu_custom_call.1} parent=81 // pred_region
          %s1520 = smul.u32 16, %s25
          %s1522 = ssub.s32 2048, 2048
          %1523 = vsyncadd %s1513, %s1522
          %s1524 = smul.addr %s1520, 128
          %s1525 = scalar_lea.hbm %s7, %s1524
          %s1526 = sshll.u32 %s1516, 4
          %s1527 = int_to_ptr.vmem [resolvable:$true] %s1526
          %1532 = dma.vmem_to_hbm [thread:$0]  %s1527, 2048, %s1525, %s1513, 128, 128, 8
        $region98: #{tpu_custom_call.1} parent=81 // pred_fallthru
          _
      $region82: #{tpu_custom_call.1} parent=5 // pred_fallthru
        _
      %p1533 = scmp.le.s32.totalorder 2, %s16
      // Predicated region
      $region99: #{tpu_custom_call.1} parent=5 // pred_check
        %p1534 = pneg %p1533
      $region100: #{tpu_custom_call.1} parent=5 // pred_check_branch
        %1536 = sbr.rel (%p1534) target = $region102
      $region101: #{tpu_custom_call.1} parent=5 // pred_region
        %s1537 = ssub.s32 %s16, 2
        // Predicated region
        $region103: #{tpu_custom_call.1} parent=101 // pred_check
          %p1538 = pneg %p226
        $region104: #{tpu_custom_call.1} parent=101 // pred_check_branch
          %1540 = sbr.rel (%p1538) target = $region106
        $region105: #{tpu_custom_call.1} parent=101 // pred_region
          %s1541 = sand.u32 %s211, 1
          %s1542 = scalar_lea.sflag [#allocation5], %s1541
          %s1543 = sand.u32 %s211, 1
          %s1544 = smul.addr %s1543, 128
          %s1545 = scalar_lea.vmem [#allocation4], %s1544
          %1546 = dma.done %s1542, 2048
        $region106: #{tpu_custom_call.1} parent=101 // pred_fallthru
          _
      $region102: #{tpu_custom_call.1} parent=5 // pred_fallthru
        _
    $region6: #{tpu_custom_call.1} parent=1 // loop_footer
      %s20 = sadd.s32 1, %s16
    $region7: #{tpu_custom_call.1} parent=1 // loop_footer_branch
      %15 = sbr.rel target = $region3
    $region8: #{tpu_custom_call.1} parent=1 // loop_exit
      _
    %1547 = vsyncpa [#allocation5], 1
    %s1548 = scalar_lea.sflag [#allocation5], 1
    %1549 = vsyncpa %s1548, 1

</llo_original>
